<compile_context>
chip_gen: v6e
topology: v6e:2x2x1
jax: 0.10.0
libtpu: 0.0.40
codegen_flags: <defaults>
</compile_context>

<pallas_src>
import jax
import jax.numpy as jnp
from jax.experimental import pallas as pl
from jax.experimental.pallas import tpu as pltpu

N_JOINTS = 21
N_QUAT = 4
IN_DIM = N_JOINTS * N_QUAT      # 84
HIDDEN = 128                    # synthetic DFNet hidden width (production uses 512)
OUT_PAD = 128                   # lane-dense output width; only column 0 is meaningful
EPS = 1e-12                     # F.normalize default eps
DEFAULT_BLOCK_ROWS = 2048       # batch tile rows (multiple of 8; out tile needs >=128)


def _round_up(n, m):
    return ((n + m - 1) // m) * m


def _posendf_kernel(x_ref, w1_ref, b1_ref, w2_ref, b2_ref, w3_ref, b3_ref, out_ref):
    x = x_ref[...]                                                   # (TB, 84) f32

    # --- F.normalize(pose, dim=1): L2 norm over the 21 joints, per quat component.
    # Selection matrix Mc[j*4+c, c] = 1 built in-kernel (compile-time pattern, no DMA).
    r = jax.lax.broadcasted_iota(jnp.int32, (IN_DIM, N_QUAT), 0)
    c = jax.lax.broadcasted_iota(jnp.int32, (IN_DIM, N_QUAT), 1)
    mc = (r % N_QUAT == c).astype(jnp.float32)                       # (84, 4)

    ssq = jnp.dot(x * x, mc, preferred_element_type=jnp.float32)     # (TB, 4)
    inv = pl.reciprocal(jnp.maximum(jnp.sqrt(ssq), EPS))             # exact recip, (TB, 4)
    # Lane tile/broadcast of the per-component inverse norm (replaces the K=4 MXU
    # broadcast matmul + VALU divide of the previous version).
    xn = x * jnp.tile(inv, (1, N_JOINTS))                            # (TB, 84)

    # --- DFNet MLP: 84 -> H -> H -> 1.  bf16 MXU inputs, f32 accumulation.
    h1 = jnp.dot(xn.astype(jnp.bfloat16), w1_ref[...],
                 preferred_element_type=jnp.float32) + b1_ref[...]
    h1 = jnp.maximum(h1, 0.0)
    h2 = jnp.dot(h1.astype(jnp.bfloat16), w2_ref[...],
                 preferred_element_type=jnp.float32) + b2_ref[...]
    h2 = jnp.maximum(h2, 0.0)
    # Final layer against w3 zero-padded to (H, OUT_PAD): the (TB, 128) result makes
    # the output stores lane-dense (no masked vst.msk); column 0 holds the distance.
    out = jnp.dot(h2.astype(jnp.bfloat16), w3_ref[...],
                  preferred_element_type=jnp.float32) + b3_ref[0, 0]
    out_ref[...] = out                                               # (TB, 128)


def posendf_forward(pose, params, block_rows=DEFAULT_BLOCK_ROWS):
    """Eval-mode PoseNDF forward. pose: (..., 21, 4) float32 -> {'dist_pred': (B, 1)}."""
    pose = pose.reshape(-1, N_JOINTS, N_QUAT).astype(jnp.float32)
    batch = pose.shape[0]
    x = pose.reshape(batch, IN_DIM)          # joint-major flatten, matches torch reshape

    tb = max(128, min(block_rows, _round_up(batch, 128)))
    padded = _round_up(batch, tb)
    if padded != batch:
        x = jnp.pad(x, ((0, padded - batch), (0, 0)))   # zero rows normalize to zero
    n_tiles = padded // tb

    # Weights: bf16 for the MXU (f32 accumulate in-kernel); biases stay f32.
    w1 = params["w1"].astype(jnp.bfloat16)                           # (84, H)
    b1 = params["b1"].reshape(1, HIDDEN).astype(jnp.float32)
    w2 = params["w2"].astype(jnp.bfloat16)                           # (H, H)
    b2 = params["b2"].reshape(1, HIDDEN).astype(jnp.float32)
    w3p = (jnp.zeros((HIDDEN, OUT_PAD), jnp.float32)
           .at[:, 0:1].set(params["w3"]).astype(jnp.bfloat16))       # (H, 128), col 0 real
    b3 = params["b3"].reshape(1, 1).astype(jnp.float32)

    flops = 2 * padded * (IN_DIM * N_QUAT + IN_DIM * HIDDEN
                          + HIDDEN * HIDDEN + HIDDEN * OUT_PAD)
    bytes_accessed = (padded * IN_DIM * 4 + padded * OUT_PAD * 4
                      + (w1.size + w2.size + w3p.size) * 2
                      + (b1.size + b2.size + b3.size) * 4)

    out = pl.pallas_call(
        _posendf_kernel,
        out_shape=jax.ShapeDtypeStruct((padded, OUT_PAD), jnp.float32),
        grid=(n_tiles,),
        in_specs=[
            pl.BlockSpec((tb, IN_DIM), lambda i: (i, 0)),        # pose tile (pipelined)
            pl.BlockSpec((IN_DIM, HIDDEN), lambda i: (0, 0)),    # w1: VMEM-resident
            pl.BlockSpec((1, HIDDEN), lambda i: (0, 0)),         # b1
            pl.BlockSpec((HIDDEN, HIDDEN), lambda i: (0, 0)),    # w2
            pl.BlockSpec((1, HIDDEN), lambda i: (0, 0)),         # b2
            pl.BlockSpec((HIDDEN, OUT_PAD), lambda i: (0, 0)),   # w3 (zero-padded)
            pl.BlockSpec(memory_space=pltpu.MemorySpace.SMEM),   # b3 scalar in SMEM
        ],
        out_specs=pl.BlockSpec((tb, OUT_PAD), lambda i: (i, 0)),
        compiler_params=pltpu.CompilerParams(
            dimension_semantics=("parallel",),        # shard batch tiles across TCs (v7x)
            vmem_limit_bytes=32 * 1024 * 1024),
        cost_estimate=pl.CostEstimate(
            flops=flops, transcendentals=padded * N_QUAT, bytes_accessed=bytes_accessed),
    )(x, w1, b1, w2, b2, w3p, b3)

    return {"dist_pred": out[:batch, 0:1]}


def make_params(key):
    k1, k2, k3 = jax.random.split(key, 3)
    scale = 0.05
    return {
        "w1": scale * jax.random.normal(k1, (IN_DIM, HIDDEN), jnp.float32),
        "b1": jnp.zeros((1, HIDDEN), jnp.float32),
        "w2": scale * jax.random.normal(k2, (HIDDEN, HIDDEN), jnp.float32),
        "b2": jnp.zeros((1, HIDDEN), jnp.float32),
        "w3": scale * jax.random.normal(k3, (HIDDEN, 1), jnp.float32),
        "b3": jnp.zeros((1, 1), jnp.float32),
    }


def ref_forward_matched(pose, params):
    """Pure-JAX reference mirroring the kernel's bf16-input / f32-accumulate path."""
    p = pose.reshape(-1, N_JOINTS, N_QUAT).astype(jnp.float32)
    norm = jnp.sqrt(jnp.sum(p * p, axis=1, keepdims=True))
    pn = p * (1.0 / jnp.maximum(norm, EPS))
    x = pn.reshape(p.shape[0], IN_DIM)
    h1 = jnp.maximum(
        jnp.dot(x.astype(jnp.bfloat16), params["w1"].astype(jnp.bfloat16),
                preferred_element_type=jnp.float32) + params["b1"], 0.0)
    h2 = jnp.maximum(
        jnp.dot(h1.astype(jnp.bfloat16), params["w2"].astype(jnp.bfloat16),
                preferred_element_type=jnp.float32) + params["b2"], 0.0)
    return jnp.dot(h2.astype(jnp.bfloat16), params["w3"].astype(jnp.bfloat16),
                   preferred_element_type=jnp.float32) + params["b3"]


def ref_forward_f32(pose, params):
    """Full-f32 reference mirroring the PyTorch eval-branch forward."""
    p = pose.reshape(-1, N_JOINTS, N_QUAT).astype(jnp.float32)
    norm = jnp.sqrt(jnp.sum(p * p, axis=1, keepdims=True))
    pn = p / jnp.maximum(norm, EPS)
    x = pn.reshape(p.shape[0], IN_DIM)
    h1 = jax.nn.relu(x @ params["w1"] + params["b1"])
    h2 = jax.nn.relu(h1 @ params["w2"] + params["b2"])
    return h2 @ params["w3"] + params["b3"]


if __name__ == "__main__":
    key = jax.random.PRNGKey(0)
    k_pose, k_params = jax.random.split(key)

    batch = 8
    pose = jax.random.normal(k_pose, (batch, N_JOINTS, N_QUAT), jnp.float32)
    params = make_params(k_params)

    out = posendf_forward(pose, params)
    dist_pred = jax.block_until_ready(out["dist_pred"])
    assert dist_pred.shape == (batch, 1)

    ref_bf16 = ref_forward_matched(pose, params)
    assert jnp.allclose(dist_pred, ref_bf16, atol=1e-4, rtol=1e-3), (
        "mismatch vs matched-precision reference")

    ref_f32 = ref_forward_f32(pose, params)
    assert jnp.allclose(dist_pred, ref_f32, atol=1e-2, rtol=1e-2), (
        "mismatch vs f32 reference")

    print("KERNEL_OK")
</pallas_src>

<mosaic_0001>
module attributes {stable_mosaic.version = 11 : i64} {
  func.func @_posendf_kernel(%arg0: i32, %arg1: memref<128x84xf32, #tpu.memory_space<vmem>>, %arg2: memref<84x128xbf16, #tpu.memory_space<vmem>>, %arg3: memref<1x128xf32, #tpu.memory_space<vmem>>, %arg4: memref<128x128xbf16, #tpu.memory_space<vmem>>, %arg5: memref<1x128xf32, #tpu.memory_space<vmem>>, %arg6: memref<128x128xbf16, #tpu.memory_space<vmem>>, %arg7: memref<1x1xf32, #tpu.memory_space<smem>>, %arg8: memref<128x128xf32, #tpu.memory_space<vmem>>) attributes {dimension_semantics = [#tpu.dimension_semantics<parallel>], iteration_bounds = array<i64: 1>, scalar_prefetch = 0 : i64, scratch_operands = 0 : i64, tpu.core_type = #tpu.core_type<tc>, window_params = [{transform_indices = @transform_0, window_bounds = array<i64: 128, 84>}, {pipeline_mode = #tpu.pipeline_mode<synchronous>, transform_indices = @transform_1, window_bounds = array<i64: 84, 128>}, {pipeline_mode = #tpu.pipeline_mode<synchronous>, transform_indices = @transform_2, window_bounds = array<i64: 1, 128>}, {pipeline_mode = #tpu.pipeline_mode<synchronous>, transform_indices = @transform_3, window_bounds = array<i64: 128, 128>}, {pipeline_mode = #tpu.pipeline_mode<synchronous>, transform_indices = @transform_4, window_bounds = array<i64: 1, 128>}, {pipeline_mode = #tpu.pipeline_mode<synchronous>, transform_indices = @transform_5, window_bounds = array<i64: 128, 128>}, {transform_indices = @transform_6, window_bounds = array<i64: 1, 1>}, {transform_indices = @transform_7, window_bounds = array<i64: 128, 128>}]} {
    %c0 = arith.constant 0 : index
    %c0_0 = arith.constant 0 : index
    %0 = vector.load %arg1[%c0, %c0_0] : memref<128x84xf32, #tpu.memory_space<vmem>>, vector<128x84xf32>
    %1 = tpu.iota {dimensions = array<i32: 0>} : vector<84x4xi32>
    %2 = tpu.iota {dimensions = array<i32: 1>} : vector<84x4xi32>
    %c4_i32 = arith.constant 4 : i32
    %c0_i32 = arith.constant 0 : i32
    %3 = arith.cmpi eq, %c4_i32, %c0_i32 : i32
    %c1_i32 = arith.constant 1 : i32
    %4 = arith.select %3, %c1_i32, %c4_i32 : i32
    %5 = vector.broadcast %4 : i32 to vector<84x4xi32>
    %6 = arith.remsi %1, %5 : vector<84x4xi32>
    %c0_i32_1 = arith.constant 0 : i32
    %7 = vector.broadcast %c0_i32_1 : i32 to vector<84x4xi32>
    %8 = arith.cmpi ne, %6, %7 : vector<84x4xi32>
    %c0_i32_2 = arith.constant 0 : i32
    %9 = vector.broadcast %c0_i32_2 : i32 to vector<84x4xi32>
    %10 = arith.cmpi slt, %6, %9 : vector<84x4xi32>
    %c0_i32_3 = arith.constant 0 : i32
    %11 = arith.cmpi slt, %4, %c0_i32_3 : i32
    %12 = vector.broadcast %11 : i1 to vector<84x4xi1>
    %13 = vector.broadcast %12 : vector<84x4xi1> to vector<84x4xi1>
    %14 = arith.xori %10, %13 : vector<84x4xi1>
    %15 = arith.andi %14, %8 : vector<84x4xi1>
    %16 = vector.broadcast %4 : i32 to vector<84x4xi32>
    %17 = arith.addi %6, %16 : vector<84x4xi32>
    %18 = arith.select %15, %17, %6 : vector<84x4xi1>, vector<84x4xi32>
    %19 = arith.cmpi eq, %18, %2 : vector<84x4xi32>
    %20 = arith.extui %19 : vector<84x4xi1> to vector<84x4xi32>
    %21 = arith.sitofp %20 : vector<84x4xi32> to vector<84x4xf32>
    %22 = arith.mulf %0, %0 : vector<128x84xf32>
    %cst = arith.constant dense<0.000000e+00> : vector<128x4xf32>
    %23 = tpu.matmul %22, %21, %cst {dimension_numbers = #tpu.dot_dimension_numbers<[1], [0], [0], [1], [0, 0, 1, 1], [], []>} : vector<128x84xf32>, vector<84x4xf32>, vector<128x4xf32> -> vector<128x4xf32>
    %24 = math.sqrt %23 : vector<128x4xf32>
    %cst_4 = arith.constant 9.99999996E-13 : f32
    %25 = vector.broadcast %cst_4 : f32 to vector<128x4xf32>
    %26 = arith.maximumf %24, %25 : vector<128x4xf32>
    %27 = tpu.reciprocal %26 : vector<128x4xf32> -> vector<128x4xf32>
    %28 = tpu.concatenate %27, %27, %27, %27, %27, %27, %27, %27, %27, %27, %27, %27, %27, %27, %27, %27, %27, %27, %27, %27, %27 in 1 : vector<128x4xf32>, vector<128x4xf32>, vector<128x4xf32>, vector<128x4xf32>, vector<128x4xf32>, vector<128x4xf32>, vector<128x4xf32>, vector<128x4xf32>, vector<128x4xf32>, vector<128x4xf32>, vector<128x4xf32>, vector<128x4xf32>, vector<128x4xf32>, vector<128x4xf32>, vector<128x4xf32>, vector<128x4xf32>, vector<128x4xf32>, vector<128x4xf32>, vector<128x4xf32>, vector<128x4xf32>, vector<128x4xf32> -> vector<128x84xf32>
    %29 = arith.mulf %0, %28 : vector<128x84xf32>
    %30 = arith.truncf %29 : vector<128x84xf32> to vector<128x84xbf16>
    %c0_5 = arith.constant 0 : index
    %c0_6 = arith.constant 0 : index
    %31 = vector.load %arg2[%c0_5, %c0_6] : memref<84x128xbf16, #tpu.memory_space<vmem>>, vector<84x128xbf16>
    %cst_7 = arith.constant dense<0.000000e+00> : vector<128x128xf32>
    %32 = tpu.matmul %30, %31, %cst_7 {dimension_numbers = #tpu.dot_dimension_numbers<[1], [0], [0], [1], [0, 0, 1, 1], [], []>} : vector<128x84xbf16>, vector<84x128xbf16>, vector<128x128xf32> -> vector<128x128xf32>
    %c0_8 = arith.constant 0 : index
    %c0_9 = arith.constant 0 : index
    %33 = vector.load %arg3[%c0_8, %c0_9] : memref<1x128xf32, #tpu.memory_space<vmem>>, vector<1x128xf32>
    %34 = vector.broadcast %33 : vector<1x128xf32> to vector<128x128xf32>
    %35 = arith.addf %32, %34 : vector<128x128xf32>
    %cst_10 = arith.constant 0.000000e+00 : f32
    %36 = vector.broadcast %cst_10 : f32 to vector<128x128xf32>
    %37 = arith.maximumf %35, %36 : vector<128x128xf32>
    %38 = arith.truncf %37 : vector<128x128xf32> to vector<128x128xbf16>
    %c0_11 = arith.constant 0 : index
    %c0_12 = arith.constant 0 : index
    %39 = vector.load %arg4[%c0_11, %c0_12] : memref<128x128xbf16, #tpu.memory_space<vmem>>, vector<128x128xbf16>
    %cst_13 = arith.constant dense<0.000000e+00> : vector<128x128xf32>
    %40 = tpu.matmul %38, %39, %cst_13 {dimension_numbers = #tpu.dot_dimension_numbers<[1], [0], [0], [1], [0, 0, 1, 1], [], []>} : vector<128x128xbf16>, vector<128x128xbf16>, vector<128x128xf32> -> vector<128x128xf32>
    %c0_14 = arith.constant 0 : index
    %c0_15 = arith.constant 0 : index
    %41 = vector.load %arg5[%c0_14, %c0_15] : memref<1x128xf32, #tpu.memory_space<vmem>>, vector<1x128xf32>
    %42 = vector.broadcast %41 : vector<1x128xf32> to vector<128x128xf32>
    %43 = arith.addf %40, %42 : vector<128x128xf32>
    %cst_16 = arith.constant 0.000000e+00 : f32
    %44 = vector.broadcast %cst_16 : f32 to vector<128x128xf32>
    %45 = arith.maximumf %43, %44 : vector<128x128xf32>
    %46 = arith.truncf %45 : vector<128x128xf32> to vector<128x128xbf16>
    %c0_17 = arith.constant 0 : index
    %c0_18 = arith.constant 0 : index
    %47 = vector.load %arg6[%c0_17, %c0_18] : memref<128x128xbf16, #tpu.memory_space<vmem>>, vector<128x128xbf16>
    %cst_19 = arith.constant dense<0.000000e+00> : vector<128x128xf32>
    %48 = tpu.matmul %46, %47, %cst_19 {dimension_numbers = #tpu.dot_dimension_numbers<[1], [0], [0], [1], [0, 0, 1, 1], [], []>} : vector<128x128xbf16>, vector<128x128xbf16>, vector<128x128xf32> -> vector<128x128xf32>
    %c0_20 = arith.constant 0 : index
    %c0_21 = arith.constant 0 : index
    %49 = memref.load %arg7[%c0_20, %c0_21] : memref<1x1xf32, #tpu.memory_space<smem>>
    %50 = vector.broadcast %49 : f32 to vector<128x128xf32>
    %51 = arith.addf %48, %50 : vector<128x128xf32>
    %c0_22 = arith.constant 0 : index
    %c0_23 = arith.constant 0 : index
    %52 = vector.load %arg8[%c0_22, %c0_23] : memref<128x128xf32, #tpu.memory_space<vmem>>, vector<128x128xf32>
    tpu.vector_store %arg8[%c0_22, %c0_23], %51 {strides = array<i32>} : memref<128x128xf32, #tpu.memory_space<vmem>>, vector<128x128xf32>,
    return
  }
  func.func @transform_0(%arg0: i32) -> (i32, i32) {
    %c0_i32 = arith.constant 0 : i32
    %c0_i32_0 = arith.constant 0 : i32
    return %arg0, %c0_i32 : i32, i32
  }
  func.func @transform_1(%arg0: i32) -> (i32, i32) {
    %c0_i32 = arith.constant 0 : i32
    %c0_i32_0 = arith.constant 0 : i32
    %c0_i32_1 = arith.constant 0 : i32
    return %c0_i32, %c0_i32_0 : i32, i32
  }
  func.func @transform_2(%arg0: i32) -> (i32, i32) {
    %c0_i32 = arith.constant 0 : i32
    %c0_i32_0 = arith.constant 0 : i32
    %c0_i32_1 = arith.constant 0 : i32
    return %c0_i32, %c0_i32_0 : i32, i32
  }
  func.func @transform_3(%arg0: i32) -> (i32, i32) {
    %c0_i32 = arith.constant 0 : i32
    %c0_i32_0 = arith.constant 0 : i32
    %c0_i32_1 = arith.constant 0 : i32
    return %c0_i32, %c0_i32_0 : i32, i32
  }
  func.func @transform_4(%arg0: i32) -> (i32, i32) {
    %c0_i32 = arith.constant 0 : i32
    %c0_i32_0 = arith.constant 0 : i32
    %c0_i32_1 = arith.constant 0 : i32
    return %c0_i32, %c0_i32_0 : i32, i32
  }
  func.func @transform_5(%arg0: i32) -> (i32, i32) {
    %c0_i32 = arith.constant 0 : i32
    %c0_i32_0 = arith.constant 0 : i32
    %c0_i32_1 = arith.constant 0 : i32
    return %c0_i32, %c0_i32_0 : i32, i32
  }
  func.func @transform_6(%arg0: i32) -> (i32, i32) {
    %c0_i32 = arith.constant 0 : i32
    %c0_i32_0 = arith.constant 0 : i32
    %c0_i32_1 = arith.constant 0 : i32
    return %c0_i32, %c0_i32_0 : i32, i32
  }
  func.func @transform_7(%arg0: i32) -> (i32, i32) {
    %c0_i32 = arith.constant 0 : i32
    %c0_i32_0 = arith.constant 0 : i32
    return %arg0, %c0_i32 : i32, i32
  }
}

</mosaic_0001>

<llo_original>
// kernel: tpu_custom_call.1
$region0: #{tpu_custom_call.1}
  #allocation0 [shape = 'u32[]', space=smem, size = 0x4, offset = 0x4, fixed_abs, tag = 'smem constant byte address 0x4 - core index']
  #allocation1 [shape = 'u32[144,128]{1,0:T(1,128)}', space=vmem, size = 0x12000, scoped, tag = 'internal scratch']
  #allocation2 [shape = 'f32[1,1]{1,0:T(1,128)S(6)}', space=smem, size = 0x200, scoped, tag = 'scoped memory for tpu_custom_call.1']
  %s0 = inlined_call_operand.vmem [shape: f32[128,84], index: 0, kind: input, shape index: {}]
  %s1 = inlined_call_operand.vmem [shape: bf16[84,128], index: 1, kind: input, shape index: {}]
  %s2 = inlined_call_operand.vmem [shape: f32[1,128], index: 2, kind: input, shape index: {}]
  %s3 = inlined_call_operand.vmem [shape: bf16[128,128], index: 3, kind: input, shape index: {}]
  %s4 = inlined_call_operand.vmem [shape: f32[1,128], index: 4, kind: input, shape index: {}]
  %s5 = inlined_call_operand.vmem [shape: bf16[128,128], index: 5, kind: input, shape index: {}]
  %s6 = inlined_call_operand.<no memory space> [shape: f32[1,1], index: 6, kind: input, shape index: {}]
  %s7 = inlined_call_operand.hbm [shape: f32[128,128], index: 7, kind: output, shape index: {}]
  %s8 = sld [smem:[#allocation0]]
  $region38: #{tpu_custom_call.1} parent=0
    _
  %s10 = ssub.s32 1, %s8
  %s11 = scalar_select 0, %s10, %s8
  %12 = sst [smem:[#allocation2]] %s6
  $region1: #{tpu_custom_call.1} parent=0
    #allocation3 [shape = 'u8[65536]{0}', space=vmem, size = 0x10000, scoped, tag = 'output window, operand 0, single buffered']
    #allocation4 [shape = 's32[1]{0}', space=sflag, size = 0x4, scoped, tag = 'scoped memory for tpu_custom_call.1']
    %13 = vsyncpa [#allocation4], 0
    // Predicated region
    $region2: #{tpu_custom_call.1} parent=1 // pred_check
      _
    $region3: #{tpu_custom_call.1} parent=1 // pred_check_branch
      %15 = sbr.rel (0) target = $region5
    $region4: #{tpu_custom_call.1} parent=1 // pred_region
      _
    $region5: #{tpu_custom_call.1} parent=1 // pred_fallthru
      _
    // Predicated region
    $region6: #{tpu_custom_call.1} parent=1 // pred_check
      _
    $region7: #{tpu_custom_call.1} parent=1 // pred_check_branch
      %17 = sbr.rel (0) target = $region9
    $region8: #{tpu_custom_call.1} parent=1 // pred_region
      _
    $region9: #{tpu_custom_call.1} parent=1 // pred_fallthru
      _
    // Predicated region
    $region10: #{tpu_custom_call.1} parent=1 // pred_check
      _
    $region11: #{tpu_custom_call.1} parent=1 // pred_check_branch
      %19 = sbr.rel (0) target = $region13
    $region12: #{tpu_custom_call.1} parent=1 // pred_region
      _
    $region13: #{tpu_custom_call.1} parent=1 // pred_fallthru
      _
    // Predicated region
    $region14: #{tpu_custom_call.1} parent=1 // pred_check
      _
    $region15: #{tpu_custom_call.1} parent=1 // pred_check_branch
      %21 = sbr.rel (0) target = $region17
    $region16: #{tpu_custom_call.1} parent=1 // pred_region
      _
    $region17: #{tpu_custom_call.1} parent=1 // pred_fallthru
      _
    // Predicated region
    $region18: #{tpu_custom_call.1} parent=1 // pred_check
      _
    $region19: #{tpu_custom_call.1} parent=1 // pred_check_branch
      %23 = sbr.rel (0) target = $region21
    $region20: #{tpu_custom_call.1} parent=1 // pred_region
      _
    $region21: #{tpu_custom_call.1} parent=1 // pred_fallthru
      _
    // Predicated region
    $region22: #{tpu_custom_call.1} parent=1 // pred_check
      _
    $region23: #{tpu_custom_call.1} parent=1 // pred_check_branch
      %25 = sbr.rel (0) target = $region25
    $region24: #{tpu_custom_call.1} parent=1 // pred_region
      _
    $region25: #{tpu_custom_call.1} parent=1 // pred_fallthru
      _
    // Predicated region
    $region26: #{tpu_custom_call.1} parent=1 // pred_check
      _
    $region27: #{tpu_custom_call.1} parent=1 // pred_check_branch
      %27 = sbr.rel (0) target = $region29
    $region28: #{tpu_custom_call.1} parent=1 // pred_region
      _
    $region29: #{tpu_custom_call.1} parent=1 // pred_fallthru
      _
    %v29 = vld [vmem:[%s0] sm:$0xff]
    %v30 = vld [vmem:[%s0 + $0x8] sm:$0xff]
    %v31 = vld [vmem:[%s0 + $0x10] sm:$0xff]
    %v32 = vld [vmem:[%s0 + $0x18] sm:$0xff]
    %v33 = vld [vmem:[%s0 + $0x20] sm:$0xff]
    %v34 = vld [vmem:[%s0 + $0x28] sm:$0xff]
    %v35 = vld [vmem:[%s0 + $0x30] sm:$0xff]
    %v36 = vld [vmem:[%s0 + $0x38] sm:$0xff]
    %v37 = vld [vmem:[%s0 + $0x40] sm:$0xff]
    %v38 = vld [vmem:[%s0 + $0x48] sm:$0xff]
    %v39 = vld [vmem:[%s0 + $0x50] sm:$0xff]
    %v40 = vld [vmem:[%s0 + $0x58] sm:$0xff]
    %v41 = vld [vmem:[%s0 + $0x60] sm:$0xff]
    %v42 = vld [vmem:[%s0 + $0x68] sm:$0xff]
    %v43 = vld [vmem:[%s0 + $0x70] sm:$0xff]
    %v44 = vld [vmem:[%s0 + $0x78] sm:$0xff]
    %v45 = vlaneseq
    %v46 = vshrl.u32 %v45, 7
    %v47 = vadd.s32 %v46, 8
    %v48 = vadd.s32 %v46, 16
    %v49 = vadd.s32 %v46, 24
    %v50 = vadd.s32 %v46, 32
    %v51 = vadd.s32 %v46, 40
    %v52 = vadd.s32 %v46, 48
    %v53 = vadd.s32 %v46, 56
    %v54 = vadd.s32 %v46, 64
    %v55 = vadd.s32 %v46, 72
    %v56 = vadd.s32 %v46, 80
    %v57 = vlaneseq
    %v58 = vand.u32 %v57, 127
    %vm59 = vcmp.lt.s32.totalorder %v46, 0
    %v60 = vsub.s32 0, %v46
    %v61 = vsel %vm59, %v60, %v46
    %v62 = vshrl.u32 %v61, 2
    %v63 = vand.u32 %v61, 3
    %v64 = vsub.s32 0, %v63
    %v65 = vsel %vm59, %v64, %v63
    %vm66 = vcmp.lt.s32.totalorder %v47, 0
    %v67 = vsub.s32 0, %v47
    %v68 = vsel %vm66, %v67, %v47
    %v69 = vshrl.u32 %v68, 2
    %v70 = vand.u32 %v68, 3
    %v71 = vsub.s32 0, %v70
    %v72 = vsel %vm66, %v71, %v70
    %vm73 = vcmp.lt.s32.totalorder %v48, 0
    %v74 = vsub.s32 0, %v48
    %v75 = vsel %vm73, %v74, %v48
    %v76 = vshrl.u32 %v75, 2
    %v77 = vand.u32 %v75, 3
    %v78 = vsub.s32 0, %v77
    %v79 = vsel %vm73, %v78, %v77
    %vm80 = vcmp.lt.s32.totalorder %v49, 0
    %v81 = vsub.s32 0, %v49
    %v82 = vsel %vm80, %v81, %v49
    %v83 = vshrl.u32 %v82, 2
    %v84 = vand.u32 %v82, 3
    %v85 = vsub.s32 0, %v84
    %v86 = vsel %vm80, %v85, %v84
    %vm87 = vcmp.lt.s32.totalorder %v50, 0
    %v88 = vsub.s32 0, %v50
    %v89 = vsel %vm87, %v88, %v50
    %v90 = vshrl.u32 %v89, 2
    %v91 = vand.u32 %v89, 3
    %v92 = vsub.s32 0, %v91
    %v93 = vsel %vm87, %v92, %v91
    %vm94 = vcmp.lt.s32.totalorder %v51, 0
    %v95 = vsub.s32 0, %v51
    %v96 = vsel %vm94, %v95, %v51
    %v97 = vshrl.u32 %v96, 2
    %v98 = vand.u32 %v96, 3
    %v99 = vsub.s32 0, %v98
    %v100 = vsel %vm94, %v99, %v98
    %vm101 = vcmp.lt.s32.totalorder %v52, 0
    %v102 = vsub.s32 0, %v52
    %v103 = vsel %vm101, %v102, %v52
    %v104 = vshrl.u32 %v103, 2
    %v105 = vand.u32 %v103, 3
    %v106 = vsub.s32 0, %v105
    %v107 = vsel %vm101, %v106, %v105
    %vm108 = vcmp.lt.s32.totalorder %v53, 0
    %v109 = vsub.s32 0, %v53
    %v110 = vsel %vm108, %v109, %v53
    %v111 = vshrl.u32 %v110, 2
    %v112 = vand.u32 %v110, 3
    %v113 = vsub.s32 0, %v112
    %v114 = vsel %vm108, %v113, %v112
    %vm115 = vcmp.lt.s32.totalorder %v54, 0
    %v116 = vsub.s32 0, %v54
    %v117 = vsel %vm115, %v116, %v54
    %v118 = vshrl.u32 %v117, 2
    %v119 = vand.u32 %v117, 3
    %v120 = vsub.s32 0, %v119
    %v121 = vsel %vm115, %v120, %v119
    %vm122 = vcmp.lt.s32.totalorder %v55, 0
    %v123 = vsub.s32 0, %v55
    %v124 = vsel %vm122, %v123, %v55
    %v125 = vshrl.u32 %v124, 2
    %v126 = vand.u32 %v124, 3
    %v127 = vsub.s32 0, %v126
    %v128 = vsel %vm122, %v127, %v126
    %vm129 = vcmp.lt.s32.totalorder %v56, 0
    %v130 = vsub.s32 0, %v56
    %v131 = vsel %vm129, %v130, %v56
    %v132 = vshrl.u32 %v131, 2
    %v133 = vand.u32 %v131, 3
    %v134 = vsub.s32 0, %v133
    %v135 = vsel %vm129, %v134, %v133
    %vm136 = vcmp.ne.s32.totalorder %v65, 0
    %vm137 = vcmp.ne.s32.totalorder %v72, 0
    %vm138 = vcmp.ne.s32.totalorder %v79, 0
    %vm139 = vcmp.ne.s32.totalorder %v86, 0
    %vm140 = vcmp.ne.s32.totalorder %v93, 0
    %vm141 = vcmp.ne.s32.totalorder %v100, 0
    %vm142 = vcmp.ne.s32.totalorder %v107, 0
    %vm143 = vcmp.ne.s32.totalorder %v114, 0
    %vm144 = vcmp.ne.s32.totalorder %v121, 0
    %vm145 = vcmp.ne.s32.totalorder %v128, 0
    %vm146 = vcmp.ne.s32.totalorder %v135, 0
    %vm147 = vcmp.lt.s32.totalorder %v65, 0
    %vm148 = vcmp.lt.s32.totalorder %v72, 0
    %vm149 = vcmp.lt.s32.totalorder %v79, 0
    %vm150 = vcmp.lt.s32.totalorder %v86, 0
    %vm151 = vcmp.lt.s32.totalorder %v93, 0
    %vm152 = vcmp.lt.s32.totalorder %v100, 0
    %vm153 = vcmp.lt.s32.totalorder %v107, 0
    %vm154 = vcmp.lt.s32.totalorder %v114, 0
    %vm155 = vcmp.lt.s32.totalorder %v121, 0
    %vm156 = vcmp.lt.s32.totalorder %v128, 0
    %vm157 = vcmp.lt.s32.totalorder %v135, 0
    %vm158 = vmand %vm147, %vm136
    %vm159 = vmand %vm148, %vm137
    %vm160 = vmand %vm149, %vm138
    %vm161 = vmand %vm150, %vm139
    %vm162 = vmand %vm151, %vm140
    %vm163 = vmand %vm152, %vm141
    %vm164 = vmand %vm153, %vm142
    %vm165 = vmand %vm154, %vm143
    %vm166 = vmand %vm155, %vm144
    %vm167 = vmand %vm156, %vm145
    %vm168 = vmand %vm157, %vm146
    %v169 = vadd.s32 %v65, 4
    %v170 = vadd.s32 %v72, 4
    %v171 = vadd.s32 %v79, 4
    %v172 = vadd.s32 %v86, 4
    %v173 = vadd.s32 %v93, 4
    %v174 = vadd.s32 %v100, 4
    %v175 = vadd.s32 %v107, 4
    %v176 = vadd.s32 %v114, 4
    %v177 = vadd.s32 %v121, 4
    %v178 = vadd.s32 %v128, 4
    %v179 = vadd.s32 %v135, 4
    %v180 = vsel %vm158, %v169, %v65
    %v181 = vsel %vm159, %v170, %v72
    %v182 = vsel %vm160, %v171, %v79
    %v183 = vsel %vm161, %v172, %v86
    %v184 = vsel %vm162, %v173, %v93
    %v185 = vsel %vm163, %v174, %v100
    %v186 = vsel %vm164, %v175, %v107
    %v187 = vsel %vm165, %v176, %v114
    %v188 = vsel %vm166, %v177, %v121
    %v189 = vsel %vm167, %v178, %v128
    %v190 = vsel %vm168, %v179, %v135
    %vm191 = vcmp.eq.s32.totalorder %v180, %v58
    %vm192 = vcmp.eq.s32.totalorder %v181, %v58
    %vm193 = vcmp.eq.s32.totalorder %v182, %v58
    %vm194 = vcmp.eq.s32.totalorder %v183, %v58
    %vm195 = vcmp.eq.s32.totalorder %v184, %v58
    %vm196 = vcmp.eq.s32.totalorder %v185, %v58
    %vm197 = vcmp.eq.s32.totalorder %v186, %v58
    %vm198 = vcmp.eq.s32.totalorder %v187, %v58
    %vm199 = vcmp.eq.s32.totalorder %v188, %v58
    %vm200 = vcmp.eq.s32.totalorder %v189, %v58
    %vm201 = vcmp.eq.s32.totalorder %v190, %v58
    %v202 = vsel %vm191, 1, 0
    %v203 = vsel %vm192, 1, 0
    %v204 = vsel %vm193, 1, 0
    %v205 = vsel %vm194, 1, 0
    %v206 = vsel %vm195, 1, 0
    %v207 = vsel %vm196, 1, 0
    %v208 = vsel %vm197, 1, 0
    %v209 = vsel %vm198, 1, 0
    %v210 = vsel %vm199, 1, 0
    %v211 = vsel %vm200, 1, 0
    %v212 = vsel %vm201, 1, 0
    %v213 = vcvt.s32.f32 %v202
    %v214 = vcvt.s32.f32 %v203
    %v215 = vcvt.s32.f32 %v204
    %v216 = vcvt.s32.f32 %v205
    %v217 = vcvt.s32.f32 %v206
    %v218 = vcvt.s32.f32 %v207
    %v219 = vcvt.s32.f32 %v208
    %v220 = vcvt.s32.f32 %v209
    %v221 = vcvt.s32.f32 %v210
    %v222 = vcvt.s32.f32 %v211
    %v223 = vcvt.s32.f32 %v212
    %v224 = vmul.f32 %v29, %v29
    %v225 = vmul.f32 %v30, %v30
    %v226 = vmul.f32 %v31, %v31
    %v227 = vmul.f32 %v32, %v32
    %v228 = vmul.f32 %v33, %v33
    %v229 = vmul.f32 %v34, %v34
    %v230 = vmul.f32 %v35, %v35
    %v231 = vmul.f32 %v36, %v36
    %v232 = vmul.f32 %v37, %v37
    %v233 = vmul.f32 %v38, %v38
    %v234 = vmul.f32 %v39, %v39
    %v235 = vmul.f32 %v40, %v40
    %v236 = vmul.f32 %v41, %v41
    %v237 = vmul.f32 %v42, %v42
    %v238 = vmul.f32 %v43, %v43
    %v239 = vmul.f32 %v44, %v44
    %vm240 = vcmask 687104
    %v242 = vsel %vm240, %v224, 0
    %v245 = vsel %vm240, %v225, 0
    %v248 = vsel %vm240, %v226, 0
    %v251 = vsel %vm240, %v227, 0
    %v254 = vsel %vm240, %v228, 0
    %v257 = vsel %vm240, %v229, 0
    %v260 = vsel %vm240, %v230, 0
    %v263 = vsel %vm240, %v231, 0
    %v266 = vsel %vm240, %v232, 0
    %v269 = vsel %vm240, %v233, 0
    %v272 = vsel %vm240, %v234, 0
    %v275 = vsel %vm240, %v235, 0
    %v278 = vsel %vm240, %v236, 0
    %v281 = vsel %vm240, %v237, 0
    %v284 = vsel %vm240, %v238, 0
    %v287 = vsel %vm240, %v239, 0
    %vm289 = vcmask 1043456
    %v291 = vsel %vm289, %v223, 0
    %293 = vmatprep.subr.mxu0 0.0
    %294 = vmatpush1.msra.mxu0 0.0
    %295 = vmatprep.subr.mxu0 0.0
    %296 = vmatpush1.msra.mxu0 0.0
    %297 = vmatprep.subr.mxu0 0.0
    %298 = vmatpush1.msra.mxu0 0.0
    %299 = vmatprep.subr.mxu0 0.0
    %300 = vmatpush1.msra.mxu0 0.0
    %301 = vmatprep.subr.mxu0 0.0
    %302 = vmatpush1.msra.mxu0 0.0
    %303 = vmatprep.subr.mxu0 0.0
    %304 = vmatpush1.msra.mxu0 %v291
    %305 = vmatprep.subr.mxu0 0.0
    %306 = vmatpush1.msra.mxu0 %v222
    %307 = vmatprep.subr.mxu0 0.0
    %308 = vmatpush1.msra.mxu0 %v221
    %309 = vmatprep.subr.mxu0 0.0
    %310 = vmatpush1.msra.mxu0 %v220
    %311 = vmatprep.subr.mxu0 0.0
    %312 = vmatpush1.msra.mxu0 %v219
    %313 = vmatprep.subr.mxu0 0.0
    %314 = vmatpush1.msra.mxu0 %v218
    %315 = vmatprep.subr.mxu0 0.0
    %316 = vmatpush1.msra.mxu0 %v217
    %317 = vmatprep.subr.mxu0 0.0
    %318 = vmatpush1.msra.mxu0 %v216
    %319 = vmatprep.subr.mxu0 0.0
    %320 = vmatpush1.msra.mxu0 %v215
    %321 = vmatprep.subr.mxu0 0.0
    %322 = vmatpush1.msra.mxu0 %v214
    %323 = vmatprep.subr.mxu0 0.0
    %324 = vmatpush1.msra.mxu0 %v213
    %325 = vmatprep.subr.mxu0 0.0
    %326 = vmatpush2.msra.mxu0 0.0
    %327 = vmatprep.subr.mxu0 0.0
    %328 = vmatpush2.msra.mxu0 0.0
    %329 = vmatprep.subr.mxu0 0.0
    %330 = vmatpush2.msra.mxu0 0.0
    %331 = vmatprep.subr.mxu0 0.0
    %332 = vmatpush2.msra.mxu0 0.0
    %333 = vmatprep.subr.mxu0 0.0
    %334 = vmatpush2.msra.mxu0 0.0
    %335 = vmatprep.subr.mxu0 0.0
    %336 = vmatpush2.msra.mxu0 0.0
    %337 = vmatprep.subr.mxu0 0.0
    %338 = vmatpush2.msra.mxu0 0.0
    %339 = vmatprep.subr.mxu0 0.0
    %340 = vmatpush2.msra.mxu0 0.0
    %341 = vmatprep.subr.mxu0 0.0
    %342 = vmatpush2.msra.mxu0 0.0
    %343 = vmatprep.subr.mxu0 0.0
    %344 = vmatpush2.msra.mxu0 0.0
    %345 = vmatprep.subr.mxu0 0.0
    %346 = vmatpush2.msra.mxu0 0.0
    %347 = vmatprep.subr.mxu0 0.0
    %348 = vmatpush2.msra.mxu0 0.0
    %349 = vmatprep.subr.mxu0 0.0
    %350 = vmatpush2.msra.mxu0 0.0
    %351 = vmatprep.subr.mxu0 0.0
    %352 = vmatpush2.msra.mxu0 0.0
    %353 = vmatprep.subr.mxu0 0.0
    %354 = vmatpush2.msra.mxu0 0.0
    %355 = vmatprep.subr.mxu0 0.0
    %356 = vmatpush2.msra.mxu0 0.0
    %357 = vmatprep.mubr.f32.mxu0 0.0
    %358 = vmatmul.mubr.f32.gmra.mxu0 %v242
    %v359 = vpop.f32.mrf.mxu0
    %v360 = vadd.f32 0.0, %v359
    %v361 = vpop.f32.mrf.mxu0
    %362 = vmatprep.mubr.f32.mxu0 0.0
    %363 = vmatmul.mubr.f32.gmra.mxu0 %v245
    %v364 = vpop.f32.mrf.mxu0
    %v365 = vadd.f32 0.0, %v364
    %v366 = vpop.f32.mrf.mxu0
    %367 = vmatprep.mubr.f32.mxu0 0.0
    %368 = vmatmul.mubr.f32.gmra.mxu0 %v248
    %v369 = vpop.f32.mrf.mxu0
    %v370 = vadd.f32 0.0, %v369
    %v371 = vpop.f32.mrf.mxu0
    %372 = vmatprep.mubr.f32.mxu0 0.0
    %373 = vmatmul.mubr.f32.gmra.mxu0 %v251
    %v374 = vpop.f32.mrf.mxu0
    %v375 = vadd.f32 0.0, %v374
    %v376 = vpop.f32.mrf.mxu0
    %377 = vmatprep.mubr.f32.mxu0 0.0
    %378 = vmatmul.mubr.f32.gmra.mxu0 %v254
    %v379 = vpop.f32.mrf.mxu0
    %v380 = vadd.f32 0.0, %v379
    %v381 = vpop.f32.mrf.mxu0
    %382 = vmatprep.mubr.f32.mxu0 0.0
    %383 = vmatmul.mubr.f32.gmra.mxu0 %v257
    %v384 = vpop.f32.mrf.mxu0
    %v385 = vadd.f32 0.0, %v384
    %v386 = vpop.f32.mrf.mxu0
    %387 = vmatprep.mubr.f32.mxu0 0.0
    %388 = vmatmul.mubr.f32.gmra.mxu0 %v260
    %v389 = vpop.f32.mrf.mxu0
    %v390 = vadd.f32 0.0, %v389
    %v391 = vpop.f32.mrf.mxu0
    %392 = vmatprep.mubr.f32.mxu0 0.0
    %393 = vmatmul.mubr.f32.gmra.mxu0 %v263
    %v394 = vpop.f32.mrf.mxu0
    %v395 = vadd.f32 0.0, %v394
    %v396 = vpop.f32.mrf.mxu0
    %397 = vmatprep.mubr.f32.mxu0 0.0
    %398 = vmatmul.mubr.f32.gmra.mxu0 %v266
    %v399 = vpop.f32.mrf.mxu0
    %v400 = vadd.f32 0.0, %v399
    %v401 = vpop.f32.mrf.mxu0
    %402 = vmatprep.mubr.f32.mxu0 0.0
    %403 = vmatmul.mubr.f32.gmra.mxu0 %v269
    %v404 = vpop.f32.mrf.mxu0
    %v405 = vadd.f32 0.0, %v404
    %v406 = vpop.f32.mrf.mxu0
    %407 = vmatprep.mubr.f32.mxu0 0.0
    %408 = vmatmul.mubr.f32.gmra.mxu0 %v272
    %v409 = vpop.f32.mrf.mxu0
    %v410 = vadd.f32 0.0, %v409
    %v411 = vpop.f32.mrf.mxu0
    %412 = vmatprep.mubr.f32.mxu0 0.0
    %413 = vmatmul.mubr.f32.gmra.mxu0 %v275
    %v414 = vpop.f32.mrf.mxu0
    %v415 = vadd.f32 0.0, %v414
    %v416 = vpop.f32.mrf.mxu0
    %417 = vmatprep.mubr.f32.mxu0 0.0
    %418 = vmatmul.mubr.f32.gmra.mxu0 %v278
    %v419 = vpop.f32.mrf.mxu0
    %v420 = vadd.f32 0.0, %v419
    %v421 = vpop.f32.mrf.mxu0
    %422 = vmatprep.mubr.f32.mxu0 0.0
    %423 = vmatmul.mubr.f32.gmra.mxu0 %v281
    %v424 = vpop.f32.mrf.mxu0
    %v425 = vadd.f32 0.0, %v424
    %v426 = vpop.f32.mrf.mxu0
    %427 = vmatprep.mubr.f32.mxu0 0.0
    %428 = vmatmul.mubr.f32.gmra.mxu0 %v284
    %v429 = vpop.f32.mrf.mxu0
    %v430 = vadd.f32 0.0, %v429
    %v431 = vpop.f32.mrf.mxu0
    %432 = vmatprep.mubr.f32.mxu0 0.0
    %433 = vmatmul.mubr.f32.gmra.mxu0 %v287
    %v434 = vpop.f32.mrf.mxu0
    %v435 = vadd.f32 0.0, %v434
    %v436 = vpop.f32.mrf.mxu0
    %437 = vdwg.mxu0
    %v438 = vrsqrt.pop %v360
    %v439 = vmul.f32 %v360, %v438
    %vm440 = vcmp.eq.f32.partialorder %v360, inf
    %v441 = vsel %vm440, %v360, %v439
    %vm442 = vcmp.eq.f32.partialorder %v360, 0.0
    %v443 = vand.u32 %v360, 2147483648
    %v444 = vsel %vm442, %v443, %v441
    %v445 = vrsqrt.pop %v365
    %v446 = vmul.f32 %v365, %v445
    %vm447 = vcmp.eq.f32.partialorder %v365, inf
    %v448 = vsel %vm447, %v365, %v446
    %vm449 = vcmp.eq.f32.partialorder %v365, 0.0
    %v450 = vand.u32 %v365, 2147483648
    %v451 = vsel %vm449, %v450, %v448
    %v452 = vrsqrt.pop %v370
    %v453 = vmul.f32 %v370, %v452
    %vm454 = vcmp.eq.f32.partialorder %v370, inf
    %v455 = vsel %vm454, %v370, %v453
    %vm456 = vcmp.eq.f32.partialorder %v370, 0.0
    %v457 = vand.u32 %v370, 2147483648
    %v458 = vsel %vm456, %v457, %v455
    %v459 = vrsqrt.pop %v375
    %v460 = vmul.f32 %v375, %v459
    %vm461 = vcmp.eq.f32.partialorder %v375, inf
    %v462 = vsel %vm461, %v375, %v460
    %vm463 = vcmp.eq.f32.partialorder %v375, 0.0
    %v464 = vand.u32 %v375, 2147483648
    %v465 = vsel %vm463, %v464, %v462
    %v466 = vrsqrt.pop %v380
    %v467 = vmul.f32 %v380, %v466
    %vm468 = vcmp.eq.f32.partialorder %v380, inf
    %v469 = vsel %vm468, %v380, %v467
    %vm470 = vcmp.eq.f32.partialorder %v380, 0.0
    %v471 = vand.u32 %v380, 2147483648
    %v472 = vsel %vm470, %v471, %v469
    %v473 = vrsqrt.pop %v385
    %v474 = vmul.f32 %v385, %v473
    %vm475 = vcmp.eq.f32.partialorder %v385, inf
    %v476 = vsel %vm475, %v385, %v474
    %vm477 = vcmp.eq.f32.partialorder %v385, 0.0
    %v478 = vand.u32 %v385, 2147483648
    %v479 = vsel %vm477, %v478, %v476
    %v480 = vrsqrt.pop %v390
    %v481 = vmul.f32 %v390, %v480
    %vm482 = vcmp.eq.f32.partialorder %v390, inf
    %v483 = vsel %vm482, %v390, %v481
    %vm484 = vcmp.eq.f32.partialorder %v390, 0.0
    %v485 = vand.u32 %v390, 2147483648
    %v486 = vsel %vm484, %v485, %v483
    %v487 = vrsqrt.pop %v395
    %v488 = vmul.f32 %v395, %v487
    %vm489 = vcmp.eq.f32.partialorder %v395, inf
    %v490 = vsel %vm489, %v395, %v488
    %vm491 = vcmp.eq.f32.partialorder %v395, 0.0
    %v492 = vand.u32 %v395, 2147483648
    %v493 = vsel %vm491, %v492, %v490
    %v494 = vrsqrt.pop %v400
    %v495 = vmul.f32 %v400, %v494
    %vm496 = vcmp.eq.f32.partialorder %v400, inf
    %v497 = vsel %vm496, %v400, %v495
    %vm498 = vcmp.eq.f32.partialorder %v400, 0.0
    %v499 = vand.u32 %v400, 2147483648
    %v500 = vsel %vm498, %v499, %v497
    %v501 = vrsqrt.pop %v405
    %v502 = vmul.f32 %v405, %v501
    %vm503 = vcmp.eq.f32.partialorder %v405, inf
    %v504 = vsel %vm503, %v405, %v502
    %vm505 = vcmp.eq.f32.partialorder %v405, 0.0
    %v506 = vand.u32 %v405, 2147483648
    %v507 = vsel %vm505, %v506, %v504
    %v508 = vrsqrt.pop %v410
    %v509 = vmul.f32 %v410, %v508
    %vm510 = vcmp.eq.f32.partialorder %v410, inf
    %v511 = vsel %vm510, %v410, %v509
    %vm512 = vcmp.eq.f32.partialorder %v410, 0.0
    %v513 = vand.u32 %v410, 2147483648
    %v514 = vsel %vm512, %v513, %v511
    %v515 = vrsqrt.pop %v415
    %v516 = vmul.f32 %v415, %v515
    %vm517 = vcmp.eq.f32.partialorder %v415, inf
    %v518 = vsel %vm517, %v415, %v516
    %vm519 = vcmp.eq.f32.partialorder %v415, 0.0
    %v520 = vand.u32 %v415, 2147483648
    %v521 = vsel %vm519, %v520, %v518
    %v522 = vrsqrt.pop %v420
    %v523 = vmul.f32 %v420, %v522
    %vm524 = vcmp.eq.f32.partialorder %v420, inf
    %v525 = vsel %vm524, %v420, %v523
    %vm526 = vcmp.eq.f32.partialorder %v420, 0.0
    %v527 = vand.u32 %v420, 2147483648
    %v528 = vsel %vm526, %v527, %v525
    %v529 = vrsqrt.pop %v425
    %v530 = vmul.f32 %v425, %v529
    %vm531 = vcmp.eq.f32.partialorder %v425, inf
    %v532 = vsel %vm531, %v425, %v530
    %vm533 = vcmp.eq.f32.partialorder %v425, 0.0
    %v534 = vand.u32 %v425, 2147483648
    %v535 = vsel %vm533, %v534, %v532
    %v536 = vrsqrt.pop %v430
    %v537 = vmul.f32 %v430, %v536
    %vm538 = vcmp.eq.f32.partialorder %v430, inf
    %v539 = vsel %vm538, %v430, %v537
    %vm540 = vcmp.eq.f32.partialorder %v430, 0.0
    %v541 = vand.u32 %v430, 2147483648
    %v542 = vsel %vm540, %v541, %v539
    %v543 = vrsqrt.pop %v435
    %v544 = vmul.f32 %v435, %v543
    %vm545 = vcmp.eq.f32.partialorder %v435, inf
    %v546 = vsel %vm545, %v435, %v544
    %vm547 = vcmp.eq.f32.partialorder %v435, 0.0
    %v548 = vand.u32 %v435, 2147483648
    %v549 = vsel %vm547, %v548, %v546
    %v550 = vmax.f32 %v444, 1e-12
    %v551 = vmax.f32 %v451, 1e-12
    %v552 = vmax.f32 %v458, 1e-12
    %v553 = vmax.f32 %v465, 1e-12
    %v554 = vmax.f32 %v472, 1e-12
    %v555 = vmax.f32 %v479, 1e-12
    %v556 = vmax.f32 %v486, 1e-12
    %v557 = vmax.f32 %v493, 1e-12
    %v558 = vmax.f32 %v500, 1e-12
    %v559 = vmax.f32 %v507, 1e-12
    %v560 = vmax.f32 %v514, 1e-12
    %v561 = vmax.f32 %v521, 1e-12
    %v562 = vmax.f32 %v528, 1e-12
    %v563 = vmax.f32 %v535, 1e-12
    %v564 = vmax.f32 %v542, 1e-12
    %v565 = vmax.f32 %v549, 1e-12
    %v566 = vrcp.pop %v550
    %v567 = vrcp.pop %v551
    %v568 = vrcp.pop %v552
    %v569 = vrcp.pop %v553
    %v570 = vrcp.pop %v554
    %v571 = vrcp.pop %v555
    %v572 = vrcp.pop %v556
    %v573 = vrcp.pop %v557
    %v574 = vrcp.pop %v558
    %v575 = vrcp.pop %v559
    %v576 = vrcp.pop %v560
    %v577 = vrcp.pop %v561
    %v578 = vrcp.pop %v562
    %v579 = vrcp.pop %v563
    %v580 = vrcp.pop %v564
    %v581 = vrcp.pop %v565
    %598 = vrot.lane.b32.xlu0 %v566, 4
    %v599 = vpop.permute.xlu0 %598
    %600 = vrot.lane.b32.xlu0 %v567, 4
    %v601 = vpop.permute.xlu0 %600
    %602 = vrot.lane.b32.xlu0 %v568, 4
    %v603 = vpop.permute.xlu0 %602
    %604 = vrot.lane.b32.xlu0 %v569, 4
    %v605 = vpop.permute.xlu0 %604
    %606 = vrot.lane.b32.xlu0 %v570, 4
    %v607 = vpop.permute.xlu0 %606
    %608 = vrot.lane.b32.xlu0 %v571, 4
    %v609 = vpop.permute.xlu0 %608
    %610 = vrot.lane.b32.xlu0 %v572, 4
    %v611 = vpop.permute.xlu0 %610
    %612 = vrot.lane.b32.xlu0 %v573, 4
    %v613 = vpop.permute.xlu0 %612
    %614 = vrot.lane.b32.xlu0 %v574, 4
    %v615 = vpop.permute.xlu0 %614
    %616 = vrot.lane.b32.xlu0 %v575, 4
    %v617 = vpop.permute.xlu0 %616
    %618 = vrot.lane.b32.xlu0 %v576, 4
    %v619 = vpop.permute.xlu0 %618
    %620 = vrot.lane.b32.xlu0 %v577, 4
    %v621 = vpop.permute.xlu0 %620
    %622 = vrot.lane.b32.xlu0 %v578, 4
    %v623 = vpop.permute.xlu0 %622
    %624 = vrot.lane.b32.xlu0 %v579, 4
    %v625 = vpop.permute.xlu0 %624
    %626 = vrot.lane.b32.xlu0 %v580, 4
    %v627 = vpop.permute.xlu0 %626
    %628 = vrot.lane.b32.xlu0 %v581, 4
    %v629 = vpop.permute.xlu0 %628
    %646 = vrot.lane.b32.xlu0 %v566, 8
    %v647 = vpop.permute.xlu0 %646
    %648 = vrot.lane.b32.xlu0 %v567, 8
    %v649 = vpop.permute.xlu0 %648
    %650 = vrot.lane.b32.xlu0 %v568, 8
    %v651 = vpop.permute.xlu0 %650
    %652 = vrot.lane.b32.xlu0 %v569, 8
    %v653 = vpop.permute.xlu0 %652
    %654 = vrot.lane.b32.xlu0 %v570, 8
    %v655 = vpop.permute.xlu0 %654
    %656 = vrot.lane.b32.xlu0 %v571, 8
    %v657 = vpop.permute.xlu0 %656
    %658 = vrot.lane.b32.xlu0 %v572, 8
    %v659 = vpop.permute.xlu0 %658
    %660 = vrot.lane.b32.xlu0 %v573, 8
    %v661 = vpop.permute.xlu0 %660
    %662 = vrot.lane.b32.xlu0 %v574, 8
    %v663 = vpop.permute.xlu0 %662
    %664 = vrot.lane.b32.xlu0 %v575, 8
    %v665 = vpop.permute.xlu0 %664
    %666 = vrot.lane.b32.xlu0 %v576, 8
    %v667 = vpop.permute.xlu0 %666
    %668 = vrot.lane.b32.xlu0 %v577, 8
    %v669 = vpop.permute.xlu0 %668
    %670 = vrot.lane.b32.xlu0 %v578, 8
    %v671 = vpop.permute.xlu0 %670
    %672 = vrot.lane.b32.xlu0 %v579, 8
    %v673 = vpop.permute.xlu0 %672
    %674 = vrot.lane.b32.xlu0 %v580, 8
    %v675 = vpop.permute.xlu0 %674
    %676 = vrot.lane.b32.xlu0 %v581, 8
    %v677 = vpop.permute.xlu0 %676
    %694 = vrot.lane.b32.xlu0 %v566, 12
    %v695 = vpop.permute.xlu0 %694
    %696 = vrot.lane.b32.xlu0 %v567, 12
    %v697 = vpop.permute.xlu0 %696
    %698 = vrot.lane.b32.xlu0 %v568, 12
    %v699 = vpop.permute.xlu0 %698
    %700 = vrot.lane.b32.xlu0 %v569, 12
    %v701 = vpop.permute.xlu0 %700
    %702 = vrot.lane.b32.xlu0 %v570, 12
    %v703 = vpop.permute.xlu0 %702
    %704 = vrot.lane.b32.xlu0 %v571, 12
    %v705 = vpop.permute.xlu0 %704
    %706 = vrot.lane.b32.xlu0 %v572, 12
    %v707 = vpop.permute.xlu0 %706
    %708 = vrot.lane.b32.xlu0 %v573, 12
    %v709 = vpop.permute.xlu0 %708
    %710 = vrot.lane.b32.xlu0 %v574, 12
    %v711 = vpop.permute.xlu0 %710
    %712 = vrot.lane.b32.xlu0 %v575, 12
    %v713 = vpop.permute.xlu0 %712
    %714 = vrot.lane.b32.xlu0 %v576, 12
    %v715 = vpop.permute.xlu0 %714
    %716 = vrot.lane.b32.xlu0 %v577, 12
    %v717 = vpop.permute.xlu0 %716
    %718 = vrot.lane.b32.xlu0 %v578, 12
    %v719 = vpop.permute.xlu0 %718
    %720 = vrot.lane.b32.xlu0 %v579, 12
    %v721 = vpop.permute.xlu0 %720
    %722 = vrot.lane.b32.xlu0 %v580, 12
    %v723 = vpop.permute.xlu0 %722
    %724 = vrot.lane.b32.xlu0 %v581, 12
    %v725 = vpop.permute.xlu0 %724
    %742 = vrot.lane.b32.xlu0 %v566, 16
    %v743 = vpop.permute.xlu0 %742
    %744 = vrot.lane.b32.xlu0 %v567, 16
    %v745 = vpop.permute.xlu0 %744
    %746 = vrot.lane.b32.xlu0 %v568, 16
    %v747 = vpop.permute.xlu0 %746
    %748 = vrot.lane.b32.xlu0 %v569, 16
    %v749 = vpop.permute.xlu0 %748
    %750 = vrot.lane.b32.xlu0 %v570, 16
    %v751 = vpop.permute.xlu0 %750
    %752 = vrot.lane.b32.xlu0 %v571, 16
    %v753 = vpop.permute.xlu0 %752
    %754 = vrot.lane.b32.xlu0 %v572, 16
    %v755 = vpop.permute.xlu0 %754
    %756 = vrot.lane.b32.xlu0 %v573, 16
    %v757 = vpop.permute.xlu0 %756
    %758 = vrot.lane.b32.xlu0 %v574, 16
    %v759 = vpop.permute.xlu0 %758
    %760 = vrot.lane.b32.xlu0 %v575, 16
    %v761 = vpop.permute.xlu0 %760
    %762 = vrot.lane.b32.xlu0 %v576, 16
    %v763 = vpop.permute.xlu0 %762
    %764 = vrot.lane.b32.xlu0 %v577, 16
    %v765 = vpop.permute.xlu0 %764
    %766 = vrot.lane.b32.xlu0 %v578, 16
    %v767 = vpop.permute.xlu0 %766
    %768 = vrot.lane.b32.xlu0 %v579, 16
    %v769 = vpop.permute.xlu0 %768
    %770 = vrot.lane.b32.xlu0 %v580, 16
    %v771 = vpop.permute.xlu0 %770
    %772 = vrot.lane.b32.xlu0 %v581, 16
    %v773 = vpop.permute.xlu0 %772
    %790 = vrot.lane.b32.xlu0 %v566, 20
    %v791 = vpop.permute.xlu0 %790
    %792 = vrot.lane.b32.xlu0 %v567, 20
    %v793 = vpop.permute.xlu0 %792
    %794 = vrot.lane.b32.xlu0 %v568, 20
    %v795 = vpop.permute.xlu0 %794
    %796 = vrot.lane.b32.xlu0 %v569, 20
    %v797 = vpop.permute.xlu0 %796
    %798 = vrot.lane.b32.xlu0 %v570, 20
    %v799 = vpop.permute.xlu0 %798
    %800 = vrot.lane.b32.xlu0 %v571, 20
    %v801 = vpop.permute.xlu0 %800
    %802 = vrot.lane.b32.xlu0 %v572, 20
    %v803 = vpop.permute.xlu0 %802
    %804 = vrot.lane.b32.xlu0 %v573, 20
    %v805 = vpop.permute.xlu0 %804
    %806 = vrot.lane.b32.xlu0 %v574, 20
    %v807 = vpop.permute.xlu0 %806
    %808 = vrot.lane.b32.xlu0 %v575, 20
    %v809 = vpop.permute.xlu0 %808
    %810 = vrot.lane.b32.xlu0 %v576, 20
    %v811 = vpop.permute.xlu0 %810
    %812 = vrot.lane.b32.xlu0 %v577, 20
    %v813 = vpop.permute.xlu0 %812
    %814 = vrot.lane.b32.xlu0 %v578, 20
    %v815 = vpop.permute.xlu0 %814
    %816 = vrot.lane.b32.xlu0 %v579, 20
    %v817 = vpop.permute.xlu0 %816
    %818 = vrot.lane.b32.xlu0 %v580, 20
    %v819 = vpop.permute.xlu0 %818
    %820 = vrot.lane.b32.xlu0 %v581, 20
    %v821 = vpop.permute.xlu0 %820
    %838 = vrot.lane.b32.xlu0 %v566, 24
    %v839 = vpop.permute.xlu0 %838
    %840 = vrot.lane.b32.xlu0 %v567, 24
    %v841 = vpop.permute.xlu0 %840
    %842 = vrot.lane.b32.xlu0 %v568, 24
    %v843 = vpop.permute.xlu0 %842
    %844 = vrot.lane.b32.xlu0 %v569, 24
    %v845 = vpop.permute.xlu0 %844
    %846 = vrot.lane.b32.xlu0 %v570, 24
    %v847 = vpop.permute.xlu0 %846
    %848 = vrot.lane.b32.xlu0 %v571, 24
    %v849 = vpop.permute.xlu0 %848
    %850 = vrot.lane.b32.xlu0 %v572, 24
    %v851 = vpop.permute.xlu0 %850
    %852 = vrot.lane.b32.xlu0 %v573, 24
    %v853 = vpop.permute.xlu0 %852
    %854 = vrot.lane.b32.xlu0 %v574, 24
    %v855 = vpop.permute.xlu0 %854
    %856 = vrot.lane.b32.xlu0 %v575, 24
    %v857 = vpop.permute.xlu0 %856
    %858 = vrot.lane.b32.xlu0 %v576, 24
    %v859 = vpop.permute.xlu0 %858
    %860 = vrot.lane.b32.xlu0 %v577, 24
    %v861 = vpop.permute.xlu0 %860
    %862 = vrot.lane.b32.xlu0 %v578, 24
    %v863 = vpop.permute.xlu0 %862
    %864 = vrot.lane.b32.xlu0 %v579, 24
    %v865 = vpop.permute.xlu0 %864
    %866 = vrot.lane.b32.xlu0 %v580, 24
    %v867 = vpop.permute.xlu0 %866
    %868 = vrot.lane.b32.xlu0 %v581, 24
    %v869 = vpop.permute.xlu0 %868
    %886 = vrot.lane.b32.xlu0 %v566, 28
    %v887 = vpop.permute.xlu0 %886
    %888 = vrot.lane.b32.xlu0 %v567, 28
    %v889 = vpop.permute.xlu0 %888
    %890 = vrot.lane.b32.xlu0 %v568, 28
    %v891 = vpop.permute.xlu0 %890
    %892 = vrot.lane.b32.xlu0 %v569, 28
    %v893 = vpop.permute.xlu0 %892
    %894 = vrot.lane.b32.xlu0 %v570, 28
    %v895 = vpop.permute.xlu0 %894
    %896 = vrot.lane.b32.xlu0 %v571, 28
    %v897 = vpop.permute.xlu0 %896
    %898 = vrot.lane.b32.xlu0 %v572, 28
    %v899 = vpop.permute.xlu0 %898
    %900 = vrot.lane.b32.xlu0 %v573, 28
    %v901 = vpop.permute.xlu0 %900
    %902 = vrot.lane.b32.xlu0 %v574, 28
    %v903 = vpop.permute.xlu0 %902
    %904 = vrot.lane.b32.xlu0 %v575, 28
    %v905 = vpop.permute.xlu0 %904
    %906 = vrot.lane.b32.xlu0 %v576, 28
    %v907 = vpop.permute.xlu0 %906
    %908 = vrot.lane.b32.xlu0 %v577, 28
    %v909 = vpop.permute.xlu0 %908
    %910 = vrot.lane.b32.xlu0 %v578, 28
    %v911 = vpop.permute.xlu0 %910
    %912 = vrot.lane.b32.xlu0 %v579, 28
    %v913 = vpop.permute.xlu0 %912
    %914 = vrot.lane.b32.xlu0 %v580, 28
    %v915 = vpop.permute.xlu0 %914
    %916 = vrot.lane.b32.xlu0 %v581, 28
    %v917 = vpop.permute.xlu0 %916
    %934 = vrot.lane.b32.xlu0 %v566, 32
    %v935 = vpop.permute.xlu0 %934
    %936 = vrot.lane.b32.xlu0 %v567, 32
    %v937 = vpop.permute.xlu0 %936
    %938 = vrot.lane.b32.xlu0 %v568, 32
    %v939 = vpop.permute.xlu0 %938
    %940 = vrot.lane.b32.xlu0 %v569, 32
    %v941 = vpop.permute.xlu0 %940
    %942 = vrot.lane.b32.xlu0 %v570, 32
    %v943 = vpop.permute.xlu0 %942
    %944 = vrot.lane.b32.xlu0 %v571, 32
    %v945 = vpop.permute.xlu0 %944
    %946 = vrot.lane.b32.xlu0 %v572, 32
    %v947 = vpop.permute.xlu0 %946
    %948 = vrot.lane.b32.xlu0 %v573, 32
    %v949 = vpop.permute.xlu0 %948
    %950 = vrot.lane.b32.xlu0 %v574, 32
    %v951 = vpop.permute.xlu0 %950
    %952 = vrot.lane.b32.xlu0 %v575, 32
    %v953 = vpop.permute.xlu0 %952
    %954 = vrot.lane.b32.xlu0 %v576, 32
    %v955 = vpop.permute.xlu0 %954
    %956 = vrot.lane.b32.xlu0 %v577, 32
    %v957 = vpop.permute.xlu0 %956
    %958 = vrot.lane.b32.xlu0 %v578, 32
    %v959 = vpop.permute.xlu0 %958
    %960 = vrot.lane.b32.xlu0 %v579, 32
    %v961 = vpop.permute.xlu0 %960
    %962 = vrot.lane.b32.xlu0 %v580, 32
    %v963 = vpop.permute.xlu0 %962
    %964 = vrot.lane.b32.xlu0 %v581, 32
    %v965 = vpop.permute.xlu0 %964
    %982 = vrot.lane.b32.xlu0 %v566, 36
    %v983 = vpop.permute.xlu0 %982
    %984 = vrot.lane.b32.xlu0 %v567, 36
    %v985 = vpop.permute.xlu0 %984
    %986 = vrot.lane.b32.xlu0 %v568, 36
    %v987 = vpop.permute.xlu0 %986
    %988 = vrot.lane.b32.xlu0 %v569, 36
    %v989 = vpop.permute.xlu0 %988
    %990 = vrot.lane.b32.xlu0 %v570, 36
    %v991 = vpop.permute.xlu0 %990
    %992 = vrot.lane.b32.xlu0 %v571, 36
    %v993 = vpop.permute.xlu0 %992
    %994 = vrot.lane.b32.xlu0 %v572, 36
    %v995 = vpop.permute.xlu0 %994
    %996 = vrot.lane.b32.xlu0 %v573, 36
    %v997 = vpop.permute.xlu0 %996
    %998 = vrot.lane.b32.xlu0 %v574, 36
    %v999 = vpop.permute.xlu0 %998
    %1000 = vrot.lane.b32.xlu0 %v575, 36
    %v1001 = vpop.permute.xlu0 %1000
    %1002 = vrot.lane.b32.xlu0 %v576, 36
    %v1003 = vpop.permute.xlu0 %1002
    %1004 = vrot.lane.b32.xlu0 %v577, 36
    %v1005 = vpop.permute.xlu0 %1004
    %1006 = vrot.lane.b32.xlu0 %v578, 36
    %v1007 = vpop.permute.xlu0 %1006
    %1008 = vrot.lane.b32.xlu0 %v579, 36
    %v1009 = vpop.permute.xlu0 %1008
    %1010 = vrot.lane.b32.xlu0 %v580, 36
    %v1011 = vpop.permute.xlu0 %1010
    %1012 = vrot.lane.b32.xlu0 %v581, 36
    %v1013 = vpop.permute.xlu0 %1012
    %1030 = vrot.lane.b32.xlu0 %v566, 40
    %v1031 = vpop.permute.xlu0 %1030
    %1032 = vrot.lane.b32.xlu0 %v567, 40
    %v1033 = vpop.permute.xlu0 %1032
    %1034 = vrot.lane.b32.xlu0 %v568, 40
    %v1035 = vpop.permute.xlu0 %1034
    %1036 = vrot.lane.b32.xlu0 %v569, 40
    %v1037 = vpop.permute.xlu0 %1036
    %1038 = vrot.lane.b32.xlu0 %v570, 40
    %v1039 = vpop.permute.xlu0 %1038
    %1040 = vrot.lane.b32.xlu0 %v571, 40
    %v1041 = vpop.permute.xlu0 %1040
    %1042 = vrot.lane.b32.xlu0 %v572, 40
    %v1043 = vpop.permute.xlu0 %1042
    %1044 = vrot.lane.b32.xlu0 %v573, 40
    %v1045 = vpop.permute.xlu0 %1044
    %1046 = vrot.lane.b32.xlu0 %v574, 40
    %v1047 = vpop.permute.xlu0 %1046
    %1048 = vrot.lane.b32.xlu0 %v575, 40
    %v1049 = vpop.permute.xlu0 %1048
    %1050 = vrot.lane.b32.xlu0 %v576, 40
    %v1051 = vpop.permute.xlu0 %1050
    %1052 = vrot.lane.b32.xlu0 %v577, 40
    %v1053 = vpop.permute.xlu0 %1052
    %1054 = vrot.lane.b32.xlu0 %v578, 40
    %v1055 = vpop.permute.xlu0 %1054
    %1056 = vrot.lane.b32.xlu0 %v579, 40
    %v1057 = vpop.permute.xlu0 %1056
    %1058 = vrot.lane.b32.xlu0 %v580, 40
    %v1059 = vpop.permute.xlu0 %1058
    %1060 = vrot.lane.b32.xlu0 %v581, 40
    %v1061 = vpop.permute.xlu0 %1060
    %1078 = vrot.lane.b32.xlu0 %v566, 44
    %v1079 = vpop.permute.xlu0 %1078
    %1080 = vrot.lane.b32.xlu0 %v567, 44
    %v1081 = vpop.permute.xlu0 %1080
    %1082 = vrot.lane.b32.xlu0 %v568, 44
    %v1083 = vpop.permute.xlu0 %1082
    %1084 = vrot.lane.b32.xlu0 %v569, 44
    %v1085 = vpop.permute.xlu0 %1084
    %1086 = vrot.lane.b32.xlu0 %v570, 44
    %v1087 = vpop.permute.xlu0 %1086
    %1088 = vrot.lane.b32.xlu0 %v571, 44
    %v1089 = vpop.permute.xlu0 %1088
    %1090 = vrot.lane.b32.xlu0 %v572, 44
    %v1091 = vpop.permute.xlu0 %1090
    %1092 = vrot.lane.b32.xlu0 %v573, 44
    %v1093 = vpop.permute.xlu0 %1092
    %1094 = vrot.lane.b32.xlu0 %v574, 44
    %v1095 = vpop.permute.xlu0 %1094
    %1096 = vrot.lane.b32.xlu0 %v575, 44
    %v1097 = vpop.permute.xlu0 %1096
    %1098 = vrot.lane.b32.xlu0 %v576, 44
    %v1099 = vpop.permute.xlu0 %1098
    %1100 = vrot.lane.b32.xlu0 %v577, 44
    %v1101 = vpop.permute.xlu0 %1100
    %1102 = vrot.lane.b32.xlu0 %v578, 44
    %v1103 = vpop.permute.xlu0 %1102
    %1104 = vrot.lane.b32.xlu0 %v579, 44
    %v1105 = vpop.permute.xlu0 %1104
    %1106 = vrot.lane.b32.xlu0 %v580, 44
    %v1107 = vpop.permute.xlu0 %1106
    %1108 = vrot.lane.b32.xlu0 %v581, 44
    %v1109 = vpop.permute.xlu0 %1108
    %1126 = vrot.lane.b32.xlu0 %v566, 48
    %v1127 = vpop.permute.xlu0 %1126
    %1128 = vrot.lane.b32.xlu0 %v567, 48
    %v1129 = vpop.permute.xlu0 %1128
    %1130 = vrot.lane.b32.xlu0 %v568, 48
    %v1131 = vpop.permute.xlu0 %1130
    %1132 = vrot.lane.b32.xlu0 %v569, 48
    %v1133 = vpop.permute.xlu0 %1132
    %1134 = vrot.lane.b32.xlu0 %v570, 48
    %v1135 = vpop.permute.xlu0 %1134
    %1136 = vrot.lane.b32.xlu0 %v571, 48
    %v1137 = vpop.permute.xlu0 %1136
    %1138 = vrot.lane.b32.xlu0 %v572, 48
    %v1139 = vpop.permute.xlu0 %1138
    %1140 = vrot.lane.b32.xlu0 %v573, 48
    %v1141 = vpop.permute.xlu0 %1140
    %1142 = vrot.lane.b32.xlu0 %v574, 48
    %v1143 = vpop.permute.xlu0 %1142
    %1144 = vrot.lane.b32.xlu0 %v575, 48
    %v1145 = vpop.permute.xlu0 %1144
    %1146 = vrot.lane.b32.xlu0 %v576, 48
    %v1147 = vpop.permute.xlu0 %1146
    %1148 = vrot.lane.b32.xlu0 %v577, 48
    %v1149 = vpop.permute.xlu0 %1148
    %1150 = vrot.lane.b32.xlu0 %v578, 48
    %v1151 = vpop.permute.xlu0 %1150
    %1152 = vrot.lane.b32.xlu0 %v579, 48
    %v1153 = vpop.permute.xlu0 %1152
    %1154 = vrot.lane.b32.xlu0 %v580, 48
    %v1155 = vpop.permute.xlu0 %1154
    %1156 = vrot.lane.b32.xlu0 %v581, 48
    %v1157 = vpop.permute.xlu0 %1156
    %1174 = vrot.lane.b32.xlu0 %v566, 52
    %v1175 = vpop.permute.xlu0 %1174
    %1176 = vrot.lane.b32.xlu0 %v567, 52
    %v1177 = vpop.permute.xlu0 %1176
    %1178 = vrot.lane.b32.xlu0 %v568, 52
    %v1179 = vpop.permute.xlu0 %1178
    %1180 = vrot.lane.b32.xlu0 %v569, 52
    %v1181 = vpop.permute.xlu0 %1180
    %1182 = vrot.lane.b32.xlu0 %v570, 52
    %v1183 = vpop.permute.xlu0 %1182
    %1184 = vrot.lane.b32.xlu0 %v571, 52
    %v1185 = vpop.permute.xlu0 %1184
    %1186 = vrot.lane.b32.xlu0 %v572, 52
    %v1187 = vpop.permute.xlu0 %1186
    %1188 = vrot.lane.b32.xlu0 %v573, 52
    %v1189 = vpop.permute.xlu0 %1188
    %1190 = vrot.lane.b32.xlu0 %v574, 52
    %v1191 = vpop.permute.xlu0 %1190
    %1192 = vrot.lane.b32.xlu0 %v575, 52
    %v1193 = vpop.permute.xlu0 %1192
    %1194 = vrot.lane.b32.xlu0 %v576, 52
    %v1195 = vpop.permute.xlu0 %1194
    %1196 = vrot.lane.b32.xlu0 %v577, 52
    %v1197 = vpop.permute.xlu0 %1196
    %1198 = vrot.lane.b32.xlu0 %v578, 52
    %v1199 = vpop.permute.xlu0 %1198
    %1200 = vrot.lane.b32.xlu0 %v579, 52
    %v1201 = vpop.permute.xlu0 %1200
    %1202 = vrot.lane.b32.xlu0 %v580, 52
    %v1203 = vpop.permute.xlu0 %1202
    %1204 = vrot.lane.b32.xlu0 %v581, 52
    %v1205 = vpop.permute.xlu0 %1204
    %1222 = vrot.lane.b32.xlu0 %v566, 56
    %v1223 = vpop.permute.xlu0 %1222
    %1224 = vrot.lane.b32.xlu0 %v567, 56
    %v1225 = vpop.permute.xlu0 %1224
    %1226 = vrot.lane.b32.xlu0 %v568, 56
    %v1227 = vpop.permute.xlu0 %1226
    %1228 = vrot.lane.b32.xlu0 %v569, 56
    %v1229 = vpop.permute.xlu0 %1228
    %1230 = vrot.lane.b32.xlu0 %v570, 56
    %v1231 = vpop.permute.xlu0 %1230
    %1232 = vrot.lane.b32.xlu0 %v571, 56
    %v1233 = vpop.permute.xlu0 %1232
    %1234 = vrot.lane.b32.xlu0 %v572, 56
    %v1235 = vpop.permute.xlu0 %1234
    %1236 = vrot.lane.b32.xlu0 %v573, 56
    %v1237 = vpop.permute.xlu0 %1236
    %1238 = vrot.lane.b32.xlu0 %v574, 56
    %v1239 = vpop.permute.xlu0 %1238
    %1240 = vrot.lane.b32.xlu0 %v575, 56
    %v1241 = vpop.permute.xlu0 %1240
    %1242 = vrot.lane.b32.xlu0 %v576, 56
    %v1243 = vpop.permute.xlu0 %1242
    %1244 = vrot.lane.b32.xlu0 %v577, 56
    %v1245 = vpop.permute.xlu0 %1244
    %1246 = vrot.lane.b32.xlu0 %v578, 56
    %v1247 = vpop.permute.xlu0 %1246
    %1248 = vrot.lane.b32.xlu0 %v579, 56
    %v1249 = vpop.permute.xlu0 %1248
    %1250 = vrot.lane.b32.xlu0 %v580, 56
    %v1251 = vpop.permute.xlu0 %1250
    %1252 = vrot.lane.b32.xlu0 %v581, 56
    %v1253 = vpop.permute.xlu0 %1252
    %1270 = vrot.lane.b32.xlu0 %v566, 60
    %v1271 = vpop.permute.xlu0 %1270
    %1272 = vrot.lane.b32.xlu0 %v567, 60
    %v1273 = vpop.permute.xlu0 %1272
    %1274 = vrot.lane.b32.xlu0 %v568, 60
    %v1275 = vpop.permute.xlu0 %1274
    %1276 = vrot.lane.b32.xlu0 %v569, 60
    %v1277 = vpop.permute.xlu0 %1276
    %1278 = vrot.lane.b32.xlu0 %v570, 60
    %v1279 = vpop.permute.xlu0 %1278
    %1280 = vrot.lane.b32.xlu0 %v571, 60
    %v1281 = vpop.permute.xlu0 %1280
    %1282 = vrot.lane.b32.xlu0 %v572, 60
    %v1283 = vpop.permute.xlu0 %1282
    %1284 = vrot.lane.b32.xlu0 %v573, 60
    %v1285 = vpop.permute.xlu0 %1284
    %1286 = vrot.lane.b32.xlu0 %v574, 60
    %v1287 = vpop.permute.xlu0 %1286
    %1288 = vrot.lane.b32.xlu0 %v575, 60
    %v1289 = vpop.permute.xlu0 %1288
    %1290 = vrot.lane.b32.xlu0 %v576, 60
    %v1291 = vpop.permute.xlu0 %1290
    %1292 = vrot.lane.b32.xlu0 %v577, 60
    %v1293 = vpop.permute.xlu0 %1292
    %1294 = vrot.lane.b32.xlu0 %v578, 60
    %v1295 = vpop.permute.xlu0 %1294
    %1296 = vrot.lane.b32.xlu0 %v579, 60
    %v1297 = vpop.permute.xlu0 %1296
    %1298 = vrot.lane.b32.xlu0 %v580, 60
    %v1299 = vpop.permute.xlu0 %1298
    %1300 = vrot.lane.b32.xlu0 %v581, 60
    %v1301 = vpop.permute.xlu0 %1300
    %1318 = vrot.lane.b32.xlu0 %v566, 64
    %v1319 = vpop.permute.xlu0 %1318
    %1320 = vrot.lane.b32.xlu0 %v567, 64
    %v1321 = vpop.permute.xlu0 %1320
    %1322 = vrot.lane.b32.xlu0 %v568, 64
    %v1323 = vpop.permute.xlu0 %1322
    %1324 = vrot.lane.b32.xlu0 %v569, 64
    %v1325 = vpop.permute.xlu0 %1324
    %1326 = vrot.lane.b32.xlu0 %v570, 64
    %v1327 = vpop.permute.xlu0 %1326
    %1328 = vrot.lane.b32.xlu0 %v571, 64
    %v1329 = vpop.permute.xlu0 %1328
    %1330 = vrot.lane.b32.xlu0 %v572, 64
    %v1331 = vpop.permute.xlu0 %1330
    %1332 = vrot.lane.b32.xlu0 %v573, 64
    %v1333 = vpop.permute.xlu0 %1332
    %1334 = vrot.lane.b32.xlu0 %v574, 64
    %v1335 = vpop.permute.xlu0 %1334
    %1336 = vrot.lane.b32.xlu0 %v575, 64
    %v1337 = vpop.permute.xlu0 %1336
    %1338 = vrot.lane.b32.xlu0 %v576, 64
    %v1339 = vpop.permute.xlu0 %1338
    %1340 = vrot.lane.b32.xlu0 %v577, 64
    %v1341 = vpop.permute.xlu0 %1340
    %1342 = vrot.lane.b32.xlu0 %v578, 64
    %v1343 = vpop.permute.xlu0 %1342
    %1344 = vrot.lane.b32.xlu0 %v579, 64
    %v1345 = vpop.permute.xlu0 %1344
    %1346 = vrot.lane.b32.xlu0 %v580, 64
    %v1347 = vpop.permute.xlu0 %1346
    %1348 = vrot.lane.b32.xlu0 %v581, 64
    %v1349 = vpop.permute.xlu0 %1348
    %1366 = vrot.lane.b32.xlu0 %v566, 68
    %v1367 = vpop.permute.xlu0 %1366
    %1368 = vrot.lane.b32.xlu0 %v567, 68
    %v1369 = vpop.permute.xlu0 %1368
    %1370 = vrot.lane.b32.xlu0 %v568, 68
    %v1371 = vpop.permute.xlu0 %1370
    %1372 = vrot.lane.b32.xlu0 %v569, 68
    %v1373 = vpop.permute.xlu0 %1372
    %1374 = vrot.lane.b32.xlu0 %v570, 68
    %v1375 = vpop.permute.xlu0 %1374
    %1376 = vrot.lane.b32.xlu0 %v571, 68
    %v1377 = vpop.permute.xlu0 %1376
    %1378 = vrot.lane.b32.xlu0 %v572, 68
    %v1379 = vpop.permute.xlu0 %1378
    %1380 = vrot.lane.b32.xlu0 %v573, 68
    %v1381 = vpop.permute.xlu0 %1380
    %1382 = vrot.lane.b32.xlu0 %v574, 68
    %v1383 = vpop.permute.xlu0 %1382
    %1384 = vrot.lane.b32.xlu0 %v575, 68
    %v1385 = vpop.permute.xlu0 %1384
    %1386 = vrot.lane.b32.xlu0 %v576, 68
    %v1387 = vpop.permute.xlu0 %1386
    %1388 = vrot.lane.b32.xlu0 %v577, 68
    %v1389 = vpop.permute.xlu0 %1388
    %1390 = vrot.lane.b32.xlu0 %v578, 68
    %v1391 = vpop.permute.xlu0 %1390
    %1392 = vrot.lane.b32.xlu0 %v579, 68
    %v1393 = vpop.permute.xlu0 %1392
    %1394 = vrot.lane.b32.xlu0 %v580, 68
    %v1395 = vpop.permute.xlu0 %1394
    %1396 = vrot.lane.b32.xlu0 %v581, 68
    %v1397 = vpop.permute.xlu0 %1396
    %1414 = vrot.lane.b32.xlu0 %v566, 72
    %v1415 = vpop.permute.xlu0 %1414
    %1416 = vrot.lane.b32.xlu0 %v567, 72
    %v1417 = vpop.permute.xlu0 %1416
    %1418 = vrot.lane.b32.xlu0 %v568, 72
    %v1419 = vpop.permute.xlu0 %1418
    %1420 = vrot.lane.b32.xlu0 %v569, 72
    %v1421 = vpop.permute.xlu0 %1420
    %1422 = vrot.lane.b32.xlu0 %v570, 72
    %v1423 = vpop.permute.xlu0 %1422
    %1424 = vrot.lane.b32.xlu0 %v571, 72
    %v1425 = vpop.permute.xlu0 %1424
    %1426 = vrot.lane.b32.xlu0 %v572, 72
    %v1427 = vpop.permute.xlu0 %1426
    %1428 = vrot.lane.b32.xlu0 %v573, 72
    %v1429 = vpop.permute.xlu0 %1428
    %1430 = vrot.lane.b32.xlu0 %v574, 72
    %v1431 = vpop.permute.xlu0 %1430
    %1432 = vrot.lane.b32.xlu0 %v575, 72
    %v1433 = vpop.permute.xlu0 %1432
    %1434 = vrot.lane.b32.xlu0 %v576, 72
    %v1435 = vpop.permute.xlu0 %1434
    %1436 = vrot.lane.b32.xlu0 %v577, 72
    %v1437 = vpop.permute.xlu0 %1436
    %1438 = vrot.lane.b32.xlu0 %v578, 72
    %v1439 = vpop.permute.xlu0 %1438
    %1440 = vrot.lane.b32.xlu0 %v579, 72
    %v1441 = vpop.permute.xlu0 %1440
    %1442 = vrot.lane.b32.xlu0 %v580, 72
    %v1443 = vpop.permute.xlu0 %1442
    %1444 = vrot.lane.b32.xlu0 %v581, 72
    %v1445 = vpop.permute.xlu0 %1444
    %1462 = vrot.lane.b32.xlu0 %v566, 76
    %v1463 = vpop.permute.xlu0 %1462
    %1464 = vrot.lane.b32.xlu0 %v567, 76
    %v1465 = vpop.permute.xlu0 %1464
    %1466 = vrot.lane.b32.xlu0 %v568, 76
    %v1467 = vpop.permute.xlu0 %1466
    %1468 = vrot.lane.b32.xlu0 %v569, 76
    %v1469 = vpop.permute.xlu0 %1468
    %1470 = vrot.lane.b32.xlu0 %v570, 76
    %v1471 = vpop.permute.xlu0 %1470
    %1472 = vrot.lane.b32.xlu0 %v571, 76
    %v1473 = vpop.permute.xlu0 %1472
    %1474 = vrot.lane.b32.xlu0 %v572, 76
    %v1475 = vpop.permute.xlu0 %1474
    %1476 = vrot.lane.b32.xlu0 %v573, 76
    %v1477 = vpop.permute.xlu0 %1476
    %1478 = vrot.lane.b32.xlu0 %v574, 76
    %v1479 = vpop.permute.xlu0 %1478
    %1480 = vrot.lane.b32.xlu0 %v575, 76
    %v1481 = vpop.permute.xlu0 %1480
    %1482 = vrot.lane.b32.xlu0 %v576, 76
    %v1483 = vpop.permute.xlu0 %1482
    %1484 = vrot.lane.b32.xlu0 %v577, 76
    %v1485 = vpop.permute.xlu0 %1484
    %1486 = vrot.lane.b32.xlu0 %v578, 76
    %v1487 = vpop.permute.xlu0 %1486
    %1488 = vrot.lane.b32.xlu0 %v579, 76
    %v1489 = vpop.permute.xlu0 %1488
    %1490 = vrot.lane.b32.xlu0 %v580, 76
    %v1491 = vpop.permute.xlu0 %1490
    %1492 = vrot.lane.b32.xlu0 %v581, 76
    %v1493 = vpop.permute.xlu0 %1492
    %1510 = vrot.lane.b32.xlu0 %v566, 80
    %v1511 = vpop.permute.xlu0 %1510
    %1512 = vrot.lane.b32.xlu0 %v567, 80
    %v1513 = vpop.permute.xlu0 %1512
    %1514 = vrot.lane.b32.xlu0 %v568, 80
    %v1515 = vpop.permute.xlu0 %1514
    %1516 = vrot.lane.b32.xlu0 %v569, 80
    %v1517 = vpop.permute.xlu0 %1516
    %1518 = vrot.lane.b32.xlu0 %v570, 80
    %v1519 = vpop.permute.xlu0 %1518
    %1520 = vrot.lane.b32.xlu0 %v571, 80
    %v1521 = vpop.permute.xlu0 %1520
    %1522 = vrot.lane.b32.xlu0 %v572, 80
    %v1523 = vpop.permute.xlu0 %1522
    %1524 = vrot.lane.b32.xlu0 %v573, 80
    %v1525 = vpop.permute.xlu0 %1524
    %1526 = vrot.lane.b32.xlu0 %v574, 80
    %v1527 = vpop.permute.xlu0 %1526
    %1528 = vrot.lane.b32.xlu0 %v575, 80
    %v1529 = vpop.permute.xlu0 %1528
    %1530 = vrot.lane.b32.xlu0 %v576, 80
    %v1531 = vpop.permute.xlu0 %1530
    %1532 = vrot.lane.b32.xlu0 %v577, 80
    %v1533 = vpop.permute.xlu0 %1532
    %1534 = vrot.lane.b32.xlu0 %v578, 80
    %v1535 = vpop.permute.xlu0 %1534
    %1536 = vrot.lane.b32.xlu0 %v579, 80
    %v1537 = vpop.permute.xlu0 %1536
    %1538 = vrot.lane.b32.xlu0 %v580, 80
    %v1539 = vpop.permute.xlu0 %1538
    %1540 = vrot.lane.b32.xlu0 %v581, 80
    %v1541 = vpop.permute.xlu0 %1540
    %vm1558 = vcmask 31744
    %v1559 = vsel %vm1558, %v566, %v599
    %v1560 = vsel %vm1558, %v567, %v601
    %v1561 = vsel %vm1558, %v568, %v603
    %v1562 = vsel %vm1558, %v569, %v605
    %v1563 = vsel %vm1558, %v570, %v607
    %v1564 = vsel %vm1558, %v571, %v609
    %v1565 = vsel %vm1558, %v572, %v611
    %v1566 = vsel %vm1558, %v573, %v613
    %v1567 = vsel %vm1558, %v574, %v615
    %v1568 = vsel %vm1558, %v575, %v617
    %v1569 = vsel %vm1558, %v576, %v619
    %v1570 = vsel %vm1558, %v577, %v621
    %v1571 = vsel %vm1558, %v578, %v623
    %v1572 = vsel %vm1558, %v579, %v625
    %v1573 = vsel %vm1558, %v580, %v627
    %v1574 = vsel %vm1558, %v581, %v629
    %vm1575 = vcmask 64512
    %v1576 = vsel %vm1575, %v1559, %v647
    %v1577 = vsel %vm1575, %v1560, %v649
    %v1578 = vsel %vm1575, %v1561, %v651
    %v1579 = vsel %vm1575, %v1562, %v653
    %v1580 = vsel %vm1575, %v1563, %v655
    %v1581 = vsel %vm1575, %v1564, %v657
    %v1582 = vsel %vm1575, %v1565, %v659
    %v1583 = vsel %vm1575, %v1566, %v661
    %v1584 = vsel %vm1575, %v1567, %v663
    %v1585 = vsel %vm1575, %v1568, %v665
    %v1586 = vsel %vm1575, %v1569, %v667
    %v1587 = vsel %vm1575, %v1570, %v669
    %v1588 = vsel %vm1575, %v1571, %v671
    %v1589 = vsel %vm1575, %v1572, %v673
    %v1590 = vsel %vm1575, %v1573, %v675
    %v1591 = vsel %vm1575, %v1574, %v677
    %vm1592 = vcmask 97280
    %v1593 = vsel %vm1592, %v1576, %v695
    %v1594 = vsel %vm1592, %v1577, %v697
    %v1595 = vsel %vm1592, %v1578, %v699
    %v1596 = vsel %vm1592, %v1579, %v701
    %v1597 = vsel %vm1592, %v1580, %v703
    %v1598 = vsel %vm1592, %v1581, %v705
    %v1599 = vsel %vm1592, %v1582, %v707
    %v1600 = vsel %vm1592, %v1583, %v709
    %v1601 = vsel %vm1592, %v1584, %v711
    %v1602 = vsel %vm1592, %v1585, %v713
    %v1603 = vsel %vm1592, %v1586, %v715
    %v1604 = vsel %vm1592, %v1587, %v717
    %v1605 = vsel %vm1592, %v1588, %v719
    %v1606 = vsel %vm1592, %v1589, %v721
    %v1607 = vsel %vm1592, %v1590, %v723
    %v1608 = vsel %vm1592, %v1591, %v725
    %vm1609 = vcmask 130048
    %v1610 = vsel %vm1609, %v1593, %v743
    %v1611 = vsel %vm1609, %v1594, %v745
    %v1612 = vsel %vm1609, %v1595, %v747
    %v1613 = vsel %vm1609, %v1596, %v749
    %v1614 = vsel %vm1609, %v1597, %v751
    %v1615 = vsel %vm1609, %v1598, %v753
    %v1616 = vsel %vm1609, %v1599, %v755
    %v1617 = vsel %vm1609, %v1600, %v757
    %v1618 = vsel %vm1609, %v1601, %v759
    %v1619 = vsel %vm1609, %v1602, %v761
    %v1620 = vsel %vm1609, %v1603, %v763
    %v1621 = vsel %vm1609, %v1604, %v765
    %v1622 = vsel %vm1609, %v1605, %v767
    %v1623 = vsel %vm1609, %v1606, %v769
    %v1624 = vsel %vm1609, %v1607, %v771
    %v1625 = vsel %vm1609, %v1608, %v773
    %vm1626 = vcmask 162816
    %v1627 = vsel %vm1626, %v1610, %v791
    %v1628 = vsel %vm1626, %v1611, %v793
    %v1629 = vsel %vm1626, %v1612, %v795
    %v1630 = vsel %vm1626, %v1613, %v797
    %v1631 = vsel %vm1626, %v1614, %v799
    %v1632 = vsel %vm1626, %v1615, %v801
    %v1633 = vsel %vm1626, %v1616, %v803
    %v1634 = vsel %vm1626, %v1617, %v805
    %v1635 = vsel %vm1626, %v1618, %v807
    %v1636 = vsel %vm1626, %v1619, %v809
    %v1637 = vsel %vm1626, %v1620, %v811
    %v1638 = vsel %vm1626, %v1621, %v813
    %v1639 = vsel %vm1626, %v1622, %v815
    %v1640 = vsel %vm1626, %v1623, %v817
    %v1641 = vsel %vm1626, %v1624, %v819
    %v1642 = vsel %vm1626, %v1625, %v821
    %vm1643 = vcmask 195584
    %v1644 = vsel %vm1643, %v1627, %v839
    %v1645 = vsel %vm1643, %v1628, %v841
    %v1646 = vsel %vm1643, %v1629, %v843
    %v1647 = vsel %vm1643, %v1630, %v845
    %v1648 = vsel %vm1643, %v1631, %v847
    %v1649 = vsel %vm1643, %v1632, %v849
    %v1650 = vsel %vm1643, %v1633, %v851
    %v1651 = vsel %vm1643, %v1634, %v853
    %v1652 = vsel %vm1643, %v1635, %v855
    %v1653 = vsel %vm1643, %v1636, %v857
    %v1654 = vsel %vm1643, %v1637, %v859
    %v1655 = vsel %vm1643, %v1638, %v861
    %v1656 = vsel %vm1643, %v1639, %v863
    %v1657 = vsel %vm1643, %v1640, %v865
    %v1658 = vsel %vm1643, %v1641, %v867
    %v1659 = vsel %vm1643, %v1642, %v869
    %vm1660 = vcmask 228352
    %v1661 = vsel %vm1660, %v1644, %v887
    %v1662 = vsel %vm1660, %v1645, %v889
    %v1663 = vsel %vm1660, %v1646, %v891
    %v1664 = vsel %vm1660, %v1647, %v893
    %v1665 = vsel %vm1660, %v1648, %v895
    %v1666 = vsel %vm1660, %v1649, %v897
    %v1667 = vsel %vm1660, %v1650, %v899
    %v1668 = vsel %vm1660, %v1651, %v901
    %v1669 = vsel %vm1660, %v1652, %v903
    %v1670 = vsel %vm1660, %v1653, %v905
    %v1671 = vsel %vm1660, %v1654, %v907
    %v1672 = vsel %vm1660, %v1655, %v909
    %v1673 = vsel %vm1660, %v1656, %v911
    %v1674 = vsel %vm1660, %v1657, %v913
    %v1675 = vsel %vm1660, %v1658, %v915
    %v1676 = vsel %vm1660, %v1659, %v917
    %vm1677 = vcmask 261120
    %v1678 = vsel %vm1677, %v1661, %v935
    %v1679 = vsel %vm1677, %v1662, %v937
    %v1680 = vsel %vm1677, %v1663, %v939
    %v1681 = vsel %vm1677, %v1664, %v941
    %v1682 = vsel %vm1677, %v1665, %v943
    %v1683 = vsel %vm1677, %v1666, %v945
    %v1684 = vsel %vm1677, %v1667, %v947
    %v1685 = vsel %vm1677, %v1668, %v949
    %v1686 = vsel %vm1677, %v1669, %v951
    %v1687 = vsel %vm1677, %v1670, %v953
    %v1688 = vsel %vm1677, %v1671, %v955
    %v1689 = vsel %vm1677, %v1672, %v957
    %v1690 = vsel %vm1677, %v1673, %v959
    %v1691 = vsel %vm1677, %v1674, %v961
    %v1692 = vsel %vm1677, %v1675, %v963
    %v1693 = vsel %vm1677, %v1676, %v965
    %vm1694 = vcmask 293888
    %v1695 = vsel %vm1694, %v1678, %v983
    %v1696 = vsel %vm1694, %v1679, %v985
    %v1697 = vsel %vm1694, %v1680, %v987
    %v1698 = vsel %vm1694, %v1681, %v989
    %v1699 = vsel %vm1694, %v1682, %v991
    %v1700 = vsel %vm1694, %v1683, %v993
    %v1701 = vsel %vm1694, %v1684, %v995
    %v1702 = vsel %vm1694, %v1685, %v997
    %v1703 = vsel %vm1694, %v1686, %v999
    %v1704 = vsel %vm1694, %v1687, %v1001
    %v1705 = vsel %vm1694, %v1688, %v1003
    %v1706 = vsel %vm1694, %v1689, %v1005
    %v1707 = vsel %vm1694, %v1690, %v1007
    %v1708 = vsel %vm1694, %v1691, %v1009
    %v1709 = vsel %vm1694, %v1692, %v1011
    %v1710 = vsel %vm1694, %v1693, %v1013
    %vm1711 = vcmask 326656
    %v1712 = vsel %vm1711, %v1695, %v1031
    %v1713 = vsel %vm1711, %v1696, %v1033
    %v1714 = vsel %vm1711, %v1697, %v1035
    %v1715 = vsel %vm1711, %v1698, %v1037
    %v1716 = vsel %vm1711, %v1699, %v1039
    %v1717 = vsel %vm1711, %v1700, %v1041
    %v1718 = vsel %vm1711, %v1701, %v1043
    %v1719 = vsel %vm1711, %v1702, %v1045
    %v1720 = vsel %vm1711, %v1703, %v1047
    %v1721 = vsel %vm1711, %v1704, %v1049
    %v1722 = vsel %vm1711, %v1705, %v1051
    %v1723 = vsel %vm1711, %v1706, %v1053
    %v1724 = vsel %vm1711, %v1707, %v1055
    %v1725 = vsel %vm1711, %v1708, %v1057
    %v1726 = vsel %vm1711, %v1709, %v1059
    %v1727 = vsel %vm1711, %v1710, %v1061
    %vm1728 = vcmask 359424
    %v1729 = vsel %vm1728, %v1712, %v1079
    %v1730 = vsel %vm1728, %v1713, %v1081
    %v1731 = vsel %vm1728, %v1714, %v1083
    %v1732 = vsel %vm1728, %v1715, %v1085
    %v1733 = vsel %vm1728, %v1716, %v1087
    %v1734 = vsel %vm1728, %v1717, %v1089
    %v1735 = vsel %vm1728, %v1718, %v1091
    %v1736 = vsel %vm1728, %v1719, %v1093
    %v1737 = vsel %vm1728, %v1720, %v1095
    %v1738 = vsel %vm1728, %v1721, %v1097
    %v1739 = vsel %vm1728, %v1722, %v1099
    %v1740 = vsel %vm1728, %v1723, %v1101
    %v1741 = vsel %vm1728, %v1724, %v1103
    %v1742 = vsel %vm1728, %v1725, %v1105
    %v1743 = vsel %vm1728, %v1726, %v1107
    %v1744 = vsel %vm1728, %v1727, %v1109
    %vm1745 = vcmask 392192
    %v1746 = vsel %vm1745, %v1729, %v1127
    %v1747 = vsel %vm1745, %v1730, %v1129
    %v1748 = vsel %vm1745, %v1731, %v1131
    %v1749 = vsel %vm1745, %v1732, %v1133
    %v1750 = vsel %vm1745, %v1733, %v1135
    %v1751 = vsel %vm1745, %v1734, %v1137
    %v1752 = vsel %vm1745, %v1735, %v1139
    %v1753 = vsel %vm1745, %v1736, %v1141
    %v1754 = vsel %vm1745, %v1737, %v1143
    %v1755 = vsel %vm1745, %v1738, %v1145
    %v1756 = vsel %vm1745, %v1739, %v1147
    %v1757 = vsel %vm1745, %v1740, %v1149
    %v1758 = vsel %vm1745, %v1741, %v1151
    %v1759 = vsel %vm1745, %v1742, %v1153
    %v1760 = vsel %vm1745, %v1743, %v1155
    %v1761 = vsel %vm1745, %v1744, %v1157
    %vm1762 = vcmask 424960
    %v1763 = vsel %vm1762, %v1746, %v1175
    %v1764 = vsel %vm1762, %v1747, %v1177
    %v1765 = vsel %vm1762, %v1748, %v1179
    %v1766 = vsel %vm1762, %v1749, %v1181
    %v1767 = vsel %vm1762, %v1750, %v1183
    %v1768 = vsel %vm1762, %v1751, %v1185
    %v1769 = vsel %vm1762, %v1752, %v1187
    %v1770 = vsel %vm1762, %v1753, %v1189
    %v1771 = vsel %vm1762, %v1754, %v1191
    %v1772 = vsel %vm1762, %v1755, %v1193
    %v1773 = vsel %vm1762, %v1756, %v1195
    %v1774 = vsel %vm1762, %v1757, %v1197
    %v1775 = vsel %vm1762, %v1758, %v1199
    %v1776 = vsel %vm1762, %v1759, %v1201
    %v1777 = vsel %vm1762, %v1760, %v1203
    %v1778 = vsel %vm1762, %v1761, %v1205
    %vm1779 = vcmask 457728
    %v1780 = vsel %vm1779, %v1763, %v1223
    %v1781 = vsel %vm1779, %v1764, %v1225
    %v1782 = vsel %vm1779, %v1765, %v1227
    %v1783 = vsel %vm1779, %v1766, %v1229
    %v1784 = vsel %vm1779, %v1767, %v1231
    %v1785 = vsel %vm1779, %v1768, %v1233
    %v1786 = vsel %vm1779, %v1769, %v1235
    %v1787 = vsel %vm1779, %v1770, %v1237
    %v1788 = vsel %vm1779, %v1771, %v1239
    %v1789 = vsel %vm1779, %v1772, %v1241
    %v1790 = vsel %vm1779, %v1773, %v1243
    %v1791 = vsel %vm1779, %v1774, %v1245
    %v1792 = vsel %vm1779, %v1775, %v1247
    %v1793 = vsel %vm1779, %v1776, %v1249
    %v1794 = vsel %vm1779, %v1777, %v1251
    %v1795 = vsel %vm1779, %v1778, %v1253
    %vm1796 = vcmask 490496
    %v1797 = vsel %vm1796, %v1780, %v1271
    %v1798 = vsel %vm1796, %v1781, %v1273
    %v1799 = vsel %vm1796, %v1782, %v1275
    %v1800 = vsel %vm1796, %v1783, %v1277
    %v1801 = vsel %vm1796, %v1784, %v1279
    %v1802 = vsel %vm1796, %v1785, %v1281
    %v1803 = vsel %vm1796, %v1786, %v1283
    %v1804 = vsel %vm1796, %v1787, %v1285
    %v1805 = vsel %vm1796, %v1788, %v1287
    %v1806 = vsel %vm1796, %v1789, %v1289
    %v1807 = vsel %vm1796, %v1790, %v1291
    %v1808 = vsel %vm1796, %v1791, %v1293
    %v1809 = vsel %vm1796, %v1792, %v1295
    %v1810 = vsel %vm1796, %v1793, %v1297
    %v1811 = vsel %vm1796, %v1794, %v1299
    %v1812 = vsel %vm1796, %v1795, %v1301
    %vm1813 = vcmask 523264
    %v1814 = vsel %vm1813, %v1797, %v1319
    %v1815 = vsel %vm1813, %v1798, %v1321
    %v1816 = vsel %vm1813, %v1799, %v1323
    %v1817 = vsel %vm1813, %v1800, %v1325
    %v1818 = vsel %vm1813, %v1801, %v1327
    %v1819 = vsel %vm1813, %v1802, %v1329
    %v1820 = vsel %vm1813, %v1803, %v1331
    %v1821 = vsel %vm1813, %v1804, %v1333
    %v1822 = vsel %vm1813, %v1805, %v1335
    %v1823 = vsel %vm1813, %v1806, %v1337
    %v1824 = vsel %vm1813, %v1807, %v1339
    %v1825 = vsel %vm1813, %v1808, %v1341
    %v1826 = vsel %vm1813, %v1809, %v1343
    %v1827 = vsel %vm1813, %v1810, %v1345
    %v1828 = vsel %vm1813, %v1811, %v1347
    %v1829 = vsel %vm1813, %v1812, %v1349
    %vm1830 = vcmask 556032
    %v1831 = vsel %vm1830, %v1814, %v1367
    %v1832 = vsel %vm1830, %v1815, %v1369
    %v1833 = vsel %vm1830, %v1816, %v1371
    %v1834 = vsel %vm1830, %v1817, %v1373
    %v1835 = vsel %vm1830, %v1818, %v1375
    %v1836 = vsel %vm1830, %v1819, %v1377
    %v1837 = vsel %vm1830, %v1820, %v1379
    %v1838 = vsel %vm1830, %v1821, %v1381
    %v1839 = vsel %vm1830, %v1822, %v1383
    %v1840 = vsel %vm1830, %v1823, %v1385
    %v1841 = vsel %vm1830, %v1824, %v1387
    %v1842 = vsel %vm1830, %v1825, %v1389
    %v1843 = vsel %vm1830, %v1826, %v1391
    %v1844 = vsel %vm1830, %v1827, %v1393
    %v1845 = vsel %vm1830, %v1828, %v1395
    %v1846 = vsel %vm1830, %v1829, %v1397
    %vm1847 = vcmask 588800
    %v1848 = vsel %vm1847, %v1831, %v1415
    %v1849 = vsel %vm1847, %v1832, %v1417
    %v1850 = vsel %vm1847, %v1833, %v1419
    %v1851 = vsel %vm1847, %v1834, %v1421
    %v1852 = vsel %vm1847, %v1835, %v1423
    %v1853 = vsel %vm1847, %v1836, %v1425
    %v1854 = vsel %vm1847, %v1837, %v1427
    %v1855 = vsel %vm1847, %v1838, %v1429
    %v1856 = vsel %vm1847, %v1839, %v1431
    %v1857 = vsel %vm1847, %v1840, %v1433
    %v1858 = vsel %vm1847, %v1841, %v1435
    %v1859 = vsel %vm1847, %v1842, %v1437
    %v1860 = vsel %vm1847, %v1843, %v1439
    %v1861 = vsel %vm1847, %v1844, %v1441
    %v1862 = vsel %vm1847, %v1845, %v1443
    %v1863 = vsel %vm1847, %v1846, %v1445
    %vm1864 = vcmask 621568
    %v1865 = vsel %vm1864, %v1848, %v1463
    %v1866 = vsel %vm1864, %v1849, %v1465
    %v1867 = vsel %vm1864, %v1850, %v1467
    %v1868 = vsel %vm1864, %v1851, %v1469
    %v1869 = vsel %vm1864, %v1852, %v1471
    %v1870 = vsel %vm1864, %v1853, %v1473
    %v1871 = vsel %vm1864, %v1854, %v1475
    %v1872 = vsel %vm1864, %v1855, %v1477
    %v1873 = vsel %vm1864, %v1856, %v1479
    %v1874 = vsel %vm1864, %v1857, %v1481
    %v1875 = vsel %vm1864, %v1858, %v1483
    %v1876 = vsel %vm1864, %v1859, %v1485
    %v1877 = vsel %vm1864, %v1860, %v1487
    %v1878 = vsel %vm1864, %v1861, %v1489
    %v1879 = vsel %vm1864, %v1862, %v1491
    %v1880 = vsel %vm1864, %v1863, %v1493
    %vm1881 = vcmask 654336
    %v1882 = vsel %vm1881, %v1865, %v1511
    %v1883 = vsel %vm1881, %v1866, %v1513
    %v1884 = vsel %vm1881, %v1867, %v1515
    %v1885 = vsel %vm1881, %v1868, %v1517
    %v1886 = vsel %vm1881, %v1869, %v1519
    %v1887 = vsel %vm1881, %v1870, %v1521
    %v1888 = vsel %vm1881, %v1871, %v1523
    %v1889 = vsel %vm1881, %v1872, %v1525
    %v1890 = vsel %vm1881, %v1873, %v1527
    %v1891 = vsel %vm1881, %v1874, %v1529
    %v1892 = vsel %vm1881, %v1875, %v1531
    %v1893 = vsel %vm1881, %v1876, %v1533
    %v1894 = vsel %vm1881, %v1877, %v1535
    %v1895 = vsel %vm1881, %v1878, %v1537
    %v1896 = vsel %vm1881, %v1879, %v1539
    %v1897 = vsel %vm1881, %v1880, %v1541
    %v1898 = vmul.f32 %v29, %v1882
    %v1899 = vmul.f32 %v30, %v1883
    %v1900 = vmul.f32 %v31, %v1884
    %v1901 = vmul.f32 %v32, %v1885
    %v1902 = vmul.f32 %v33, %v1886
    %v1903 = vmul.f32 %v34, %v1887
    %v1904 = vmul.f32 %v35, %v1888
    %v1905 = vmul.f32 %v36, %v1889
    %v1906 = vmul.f32 %v37, %v1890
    %v1907 = vmul.f32 %v38, %v1891
    %v1908 = vmul.f32 %v39, %v1892
    %v1909 = vmul.f32 %v40, %v1893
    %v1910 = vmul.f32 %v41, %v1894
    %v1911 = vmul.f32 %v42, %v1895
    %v1912 = vmul.f32 %v43, %v1896
    %v1913 = vmul.f32 %v44, %v1897
    %v1914 = vpack.c.bf16 %v1899, %v1898
    %v1915 = vpack.c.bf16 %v1901, %v1900
    %v1916 = vpack.c.bf16 %v1903, %v1902
    %v1917 = vpack.c.bf16 %v1905, %v1904
    %v1918 = vpack.c.bf16 %v1907, %v1906
    %v1919 = vpack.c.bf16 %v1909, %v1908
    %v1920 = vpack.c.bf16 %v1911, %v1910
    %v1921 = vpack.c.bf16 %v1913, %v1912
    %v1922 = vld [vmem:[%s1] sm:$0xf]
    %v1923 = vld [vmem:[%s1 + $0x4] sm:$0xf]
    %v1924 = vld [vmem:[%s1 + $0x8] sm:$0xf]
    %v1925 = vld [vmem:[%s1 + $0xc] sm:$0xf]
    %v1926 = vld [vmem:[%s1 + $0x10] sm:$0xf]
    %v1927 = vld [vmem:[%s1 + $0x14] sm:$0xf]
    %v1928 = vld [vmem:[%s1 + $0x18] sm:$0xf]
    %v1929 = vld [vmem:[%s1 + $0x1c] sm:$0xf]
    %v1930 = vld [vmem:[%s1 + $0x20] sm:$0xf]
    %v1931 = vld [vmem:[%s1 + $0x24] sm:$0xf]
    %v1932 = vld [vmem:[%s1 + $0x28] sm:$0x3]
    %v1933 = vld [vmem:[%s2] sm:$0x1]
    %v1935 = vlaneseq
    %v1936 = vshrl.u32 %v1935, 7
    %v1937 = vsub.s32 0, %v1936
    %v1938 = vrot.slane %v1933, %v1937
    %v1951 = vunpack.c.l.b16 %v1922
    %v1952 = vunpack.c.l.b16 %v1923
    %v1953 = vunpack.c.l.b16 %v1924
    %v1954 = vunpack.c.l.b16 %v1925
    %v1955 = vunpack.c.l.b16 %v1926
    %v1956 = vunpack.c.l.b16 %v1927
    %v1957 = vunpack.c.l.b16 %v1928
    %v1958 = vunpack.c.l.b16 %v1929
    %v1959 = vunpack.c.l.b16 %v1930
    %v1960 = vunpack.c.l.b16 %v1931
    %v1961 = vunpack.c.l.b16 %v1932
    %v1962 = vpack.c.b16 %v1952, %v1951
    %v1963 = vpack.c.b16 %v1954, %v1953
    %v1964 = vpack.c.b16 %v1956, %v1955
    %v1965 = vpack.c.b16 %v1958, %v1957
    %v1966 = vpack.c.b16 %v1960, %v1959
    %v1967 = vpack.c.b16 %v1961, %v1961
    %v1974 = vsel %vm240, %v1914, 0
    %v1977 = vsel %vm240, %v1915, 0
    %v1980 = vsel %vm240, %v1916, 0
    %v1983 = vsel %vm240, %v1917, 0
    %v1986 = vsel %vm240, %v1918, 0
    %v1989 = vsel %vm240, %v1919, 0
    %v1992 = vsel %vm240, %v1920, 0
    %v1995 = vsel %vm240, %v1921, 0
    %vm1997 = vcmask 1041408
    %v1999 = vsel %vm1997, %v1967, 0
    %2001 = vmatprep.subr.bf16.mxu0 0
    %2002 = vmatpush1.bf16.msra.mxu0 0
    %2003 = vmatprep.subr.bf16.mxu0 0
    %2004 = vmatpush1.bf16.msra.mxu0 0
    %2005 = vmatprep.subr.bf16.mxu0 0
    %2006 = vmatpush1.bf16.msra.mxu0 %v1999
    %2007 = vmatprep.subr.bf16.mxu0 0
    %2008 = vmatpush1.bf16.msra.mxu0 %v1966
    %2009 = vmatprep.subr.bf16.mxu0 0
    %2010 = vmatpush1.bf16.msra.mxu0 %v1965
    %2011 = vmatprep.subr.bf16.mxu0 0
    %2012 = vmatpush1.bf16.msra.mxu0 %v1964
    %2013 = vmatprep.subr.bf16.mxu0 0
    %2014 = vmatpush1.bf16.msra.mxu0 %v1963
    %2015 = vmatprep.subr.bf16.mxu0 0
    %2016 = vmatpush1.bf16.msra.mxu0 %v1962
    %2017 = vmatprep.subr.bf16.mxu0 0
    %2018 = vmatpush2.bf16.msra.mxu0 0
    %2019 = vmatprep.subr.bf16.mxu0 0
    %2020 = vmatpush2.bf16.msra.mxu0 0
    %2021 = vmatprep.subr.bf16.mxu0 0
    %2022 = vmatpush2.bf16.msra.mxu0 0
    %2023 = vmatprep.subr.bf16.mxu0 0
    %2024 = vmatpush2.bf16.msra.mxu0 0
    %2025 = vmatprep.subr.bf16.mxu0 0
    %2026 = vmatpush2.bf16.msra.mxu0 0
    %2027 = vmatprep.subr.bf16.mxu0 0
    %2028 = vmatpush2.bf16.msra.mxu0 0
    %2029 = vmatprep.subr.bf16.mxu0 0
    %2030 = vmatpush2.bf16.msra.mxu0 0
    %2031 = vmatprep.subr.bf16.mxu0 0
    %2032 = vmatpush2.bf16.msra.mxu0 0
    %2033 = vmatprep.mubr.bf16.mxu0 0
    %2034 = vmatmul.mubr.bf16.gmra.mxu0 %v1974
    %v2035 = vpop.f32.mrf.mxu0
    %v2036 = vadd.f32 %v1938, %v2035
    %v2037 = vpop.f32.mrf.mxu0
    %v2038 = vpop.f32.mrf.mxu0
    %v2039 = vadd.f32 %v1938, %v2038
    %v2040 = vpop.f32.mrf.mxu0
    %2041 = vmatprep.mubr.bf16.mxu0 0
    %2042 = vmatmul.mubr.bf16.gmra.mxu0 %v1977
    %v2043 = vpop.f32.mrf.mxu0
    %v2044 = vadd.f32 %v1938, %v2043
    %v2045 = vpop.f32.mrf.mxu0
    %v2046 = vpop.f32.mrf.mxu0
    %v2047 = vadd.f32 %v1938, %v2046
    %v2048 = vpop.f32.mrf.mxu0
    %2049 = vmatprep.mubr.bf16.mxu0 0
    %2050 = vmatmul.mubr.bf16.gmra.mxu0 %v1980
    %v2051 = vpop.f32.mrf.mxu0
    %v2052 = vadd.f32 %v1938, %v2051
    %v2053 = vpop.f32.mrf.mxu0
    %v2054 = vpop.f32.mrf.mxu0
    %v2055 = vadd.f32 %v1938, %v2054
    %v2056 = vpop.f32.mrf.mxu0
    %2057 = vmatprep.mubr.bf16.mxu0 0
    %2058 = vmatmul.mubr.bf16.gmra.mxu0 %v1983
    %v2059 = vpop.f32.mrf.mxu0
    %v2060 = vadd.f32 %v1938, %v2059
    %v2061 = vpop.f32.mrf.mxu0
    %v2062 = vpop.f32.mrf.mxu0
    %v2063 = vadd.f32 %v1938, %v2062
    %v2064 = vpop.f32.mrf.mxu0
    %2065 = vmatprep.mubr.bf16.mxu0 0
    %2066 = vmatmul.mubr.bf16.gmra.mxu0 %v1986
    %v2067 = vpop.f32.mrf.mxu0
    %v2068 = vadd.f32 %v1938, %v2067
    %v2069 = vpop.f32.mrf.mxu0
    %v2070 = vpop.f32.mrf.mxu0
    %v2071 = vadd.f32 %v1938, %v2070
    %v2072 = vpop.f32.mrf.mxu0
    %2073 = vmatprep.mubr.bf16.mxu0 0
    %2074 = vmatmul.mubr.bf16.gmra.mxu0 %v1989
    %v2075 = vpop.f32.mrf.mxu0
    %v2076 = vadd.f32 %v1938, %v2075
    %v2077 = vpop.f32.mrf.mxu0
    %v2078 = vpop.f32.mrf.mxu0
    %v2079 = vadd.f32 %v1938, %v2078
    %v2080 = vpop.f32.mrf.mxu0
    %2081 = vmatprep.mubr.bf16.mxu0 0
    %2082 = vmatmul.mubr.bf16.gmra.mxu0 %v1992
    %v2083 = vpop.f32.mrf.mxu0
    %v2084 = vadd.f32 %v1938, %v2083
    %v2085 = vpop.f32.mrf.mxu0
    %v2086 = vpop.f32.mrf.mxu0
    %v2087 = vadd.f32 %v1938, %v2086
    %v2088 = vpop.f32.mrf.mxu0
    %2089 = vmatprep.mubr.bf16.mxu0 0
    %2090 = vmatmul.mubr.bf16.gmra.mxu0 %v1995
    %v2091 = vpop.f32.mrf.mxu0
    %v2092 = vadd.f32 %v1938, %v2091
    %v2093 = vpop.f32.mrf.mxu0
    %v2094 = vpop.f32.mrf.mxu0
    %v2095 = vadd.f32 %v1938, %v2094
    %v2096 = vpop.f32.mrf.mxu0
    %2097 = vdwg.mxu0
    %v2098 = vmax.f32 %v2036, 0.0
    %v2099 = vmax.f32 %v2039, 0.0
    %v2100 = vmax.f32 %v2044, 0.0
    %v2101 = vmax.f32 %v2047, 0.0
    %v2102 = vmax.f32 %v2052, 0.0
    %v2103 = vmax.f32 %v2055, 0.0
    %v2104 = vmax.f32 %v2060, 0.0
    %v2105 = vmax.f32 %v2063, 0.0
    %v2106 = vmax.f32 %v2068, 0.0
    %v2107 = vmax.f32 %v2071, 0.0
    %v2108 = vmax.f32 %v2076, 0.0
    %v2109 = vmax.f32 %v2079, 0.0
    %v2110 = vmax.f32 %v2084, 0.0
    %v2111 = vmax.f32 %v2087, 0.0
    %v2112 = vmax.f32 %v2092, 0.0
    %v2113 = vmax.f32 %v2095, 0.0
    %v2114 = vpack.c.bf16 %v2099, %v2098
    %v2115 = vpack.c.bf16 %v2101, %v2100
    %v2116 = vpack.c.bf16 %v2103, %v2102
    %v2117 = vpack.c.bf16 %v2105, %v2104
    %v2118 = vpack.c.bf16 %v2107, %v2106
    %v2119 = vpack.c.bf16 %v2109, %v2108
    %v2120 = vpack.c.bf16 %v2111, %v2110
    %v2121 = vpack.c.bf16 %v2113, %v2112
    %v2122 = vld [vmem:[%s3] sm:$0xf]
    %v2123 = vld [vmem:[%s3 + $0x4] sm:$0xf]
    %v2124 = vld [vmem:[%s3 + $0x8] sm:$0xf]
    %v2125 = vld [vmem:[%s3 + $0xc] sm:$0xf]
    %v2126 = vld [vmem:[%s3 + $0x10] sm:$0xf]
    %v2127 = vld [vmem:[%s3 + $0x14] sm:$0xf]
    %v2128 = vld [vmem:[%s3 + $0x18] sm:$0xf]
    %v2129 = vld [vmem:[%s3 + $0x1c] sm:$0xf]
    %v2130 = vld [vmem:[%s3 + $0x20] sm:$0xf]
    %v2131 = vld [vmem:[%s3 + $0x24] sm:$0xf]
    %v2132 = vld [vmem:[%s3 + $0x28] sm:$0xf]
    %v2133 = vld [vmem:[%s3 + $0x2c] sm:$0xf]
    %v2134 = vld [vmem:[%s3 + $0x30] sm:$0xf]
    %v2135 = vld [vmem:[%s3 + $0x34] sm:$0xf]
    %v2136 = vld [vmem:[%s3 + $0x38] sm:$0xf]
    %v2137 = vld [vmem:[%s3 + $0x3c] sm:$0xf]
    %v2138 = vld [vmem:[%s4] sm:$0x1]
    %v2140 = vlaneseq
    %v2141 = vshrl.u32 %v2140, 7
    %v2142 = vsub.s32 0, %v2141
    %v2143 = vrot.slane %v2138, %v2142
    %v2161 = vunpack.c.l.b16 %v2122
    %v2162 = vunpack.c.l.b16 %v2123
    %v2163 = vunpack.c.l.b16 %v2124
    %v2164 = vunpack.c.l.b16 %v2125
    %v2165 = vunpack.c.l.b16 %v2126
    %v2166 = vunpack.c.l.b16 %v2127
    %v2167 = vunpack.c.l.b16 %v2128
    %v2168 = vunpack.c.l.b16 %v2129
    %v2169 = vunpack.c.l.b16 %v2130
    %v2170 = vunpack.c.l.b16 %v2131
    %v2171 = vunpack.c.l.b16 %v2132
    %v2172 = vunpack.c.l.b16 %v2133
    %v2173 = vunpack.c.l.b16 %v2134
    %v2174 = vunpack.c.l.b16 %v2135
    %v2175 = vunpack.c.l.b16 %v2136
    %v2176 = vunpack.c.l.b16 %v2137
    %v2177 = vpack.c.b16 %v2162, %v2161
    %v2178 = vpack.c.b16 %v2164, %v2163
    %v2179 = vpack.c.b16 %v2166, %v2165
    %v2180 = vpack.c.b16 %v2168, %v2167
    %v2181 = vpack.c.b16 %v2170, %v2169
    %v2182 = vpack.c.b16 %v2172, %v2171
    %v2183 = vpack.c.b16 %v2174, %v2173
    %v2184 = vpack.c.b16 %v2176, %v2175
    %2193 = vmatprep.subr.bf16.mxu0 0
    %2194 = vmatpush1.bf16.msra.mxu0 %v2184
    %2195 = vmatprep.subr.bf16.mxu0 0
    %2196 = vmatpush1.bf16.msra.mxu0 %v2183
    %2197 = vmatprep.subr.bf16.mxu0 0
    %2198 = vmatpush1.bf16.msra.mxu0 %v2182
    %2199 = vmatprep.subr.bf16.mxu0 0
    %2200 = vmatpush1.bf16.msra.mxu0 %v2181
    %2201 = vmatprep.subr.bf16.mxu0 0
    %2202 = vmatpush1.bf16.msra.mxu0 %v2180
    %2203 = vmatprep.subr.bf16.mxu0 0
    %2204 = vmatpush1.bf16.msra.mxu0 %v2179
    %2205 = vmatprep.subr.bf16.mxu0 0
    %2206 = vmatpush1.bf16.msra.mxu0 %v2178
    %2207 = vmatprep.subr.bf16.mxu0 0
    %2208 = vmatpush1.bf16.msra.mxu0 %v2177
    %2209 = vmatprep.subr.bf16.mxu0 0
    %2210 = vmatpush2.bf16.msra.mxu0 0
    %2211 = vmatprep.subr.bf16.mxu0 0
    %2212 = vmatpush2.bf16.msra.mxu0 0
    %2213 = vmatprep.subr.bf16.mxu0 0
    %2214 = vmatpush2.bf16.msra.mxu0 0
    %2215 = vmatprep.subr.bf16.mxu0 0
    %2216 = vmatpush2.bf16.msra.mxu0 0
    %2217 = vmatprep.subr.bf16.mxu0 0
    %2218 = vmatpush2.bf16.msra.mxu0 0
    %2219 = vmatprep.subr.bf16.mxu0 0
    %2220 = vmatpush2.bf16.msra.mxu0 0
    %2221 = vmatprep.subr.bf16.mxu0 0
    %2222 = vmatpush2.bf16.msra.mxu0 0
    %2223 = vmatprep.subr.bf16.mxu0 0
    %2224 = vmatpush2.bf16.msra.mxu0 0
    %2225 = vmatprep.mubr.bf16.mxu0 0
    %2226 = vmatmul.mubr.bf16.gmra.mxu0 %v2114
    %v2227 = vpop.f32.mrf.mxu0
    %v2228 = vadd.f32 %v2143, %v2227
    %v2229 = vpop.f32.mrf.mxu0
    %v2230 = vpop.f32.mrf.mxu0
    %v2231 = vadd.f32 %v2143, %v2230
    %v2232 = vpop.f32.mrf.mxu0
    %2233 = vmatprep.mubr.bf16.mxu0 0
    %2234 = vmatmul.mubr.bf16.gmra.mxu0 %v2115
    %v2235 = vpop.f32.mrf.mxu0
    %v2236 = vadd.f32 %v2143, %v2235
    %v2237 = vpop.f32.mrf.mxu0
    %v2238 = vpop.f32.mrf.mxu0
    %v2239 = vadd.f32 %v2143, %v2238
    %v2240 = vpop.f32.mrf.mxu0
    %2241 = vmatprep.mubr.bf16.mxu0 0
    %2242 = vmatmul.mubr.bf16.gmra.mxu0 %v2116
    %v2243 = vpop.f32.mrf.mxu0
    %v2244 = vadd.f32 %v2143, %v2243
    %v2245 = vpop.f32.mrf.mxu0
    %v2246 = vpop.f32.mrf.mxu0
    %v2247 = vadd.f32 %v2143, %v2246
    %v2248 = vpop.f32.mrf.mxu0
    %2249 = vmatprep.mubr.bf16.mxu0 0
    %2250 = vmatmul.mubr.bf16.gmra.mxu0 %v2117
    %v2251 = vpop.f32.mrf.mxu0
    %v2252 = vadd.f32 %v2143, %v2251
    %v2253 = vpop.f32.mrf.mxu0
    %v2254 = vpop.f32.mrf.mxu0
    %v2255 = vadd.f32 %v2143, %v2254
    %v2256 = vpop.f32.mrf.mxu0
    %2257 = vmatprep.mubr.bf16.mxu0 0
    %2258 = vmatmul.mubr.bf16.gmra.mxu0 %v2118
    %v2259 = vpop.f32.mrf.mxu0
    %v2260 = vadd.f32 %v2143, %v2259
    %v2261 = vpop.f32.mrf.mxu0
    %v2262 = vpop.f32.mrf.mxu0
    %v2263 = vadd.f32 %v2143, %v2262
    %v2264 = vpop.f32.mrf.mxu0
    %2265 = vmatprep.mubr.bf16.mxu0 0
    %2266 = vmatmul.mubr.bf16.gmra.mxu0 %v2119
    %v2267 = vpop.f32.mrf.mxu0
    %v2268 = vadd.f32 %v2143, %v2267
    %v2269 = vpop.f32.mrf.mxu0
    %v2270 = vpop.f32.mrf.mxu0
    %v2271 = vadd.f32 %v2143, %v2270
    %v2272 = vpop.f32.mrf.mxu0
    %2273 = vmatprep.mubr.bf16.mxu0 0
    %2274 = vmatmul.mubr.bf16.gmra.mxu0 %v2120
    %v2275 = vpop.f32.mrf.mxu0
    %v2276 = vadd.f32 %v2143, %v2275
    %v2277 = vpop.f32.mrf.mxu0
    %v2278 = vpop.f32.mrf.mxu0
    %v2279 = vadd.f32 %v2143, %v2278
    %v2280 = vpop.f32.mrf.mxu0
    %2281 = vmatprep.mubr.bf16.mxu0 0
    %2282 = vmatmul.mubr.bf16.gmra.mxu0 %v2121
    %v2283 = vpop.f32.mrf.mxu0
    %v2284 = vadd.f32 %v2143, %v2283
    %v2285 = vpop.f32.mrf.mxu0
    %v2286 = vpop.f32.mrf.mxu0
    %v2287 = vadd.f32 %v2143, %v2286
    %v2288 = vpop.f32.mrf.mxu0
    %2289 = vdwg.mxu0
    %v2290 = vmax.f32 %v2228, 0.0
    %v2291 = vmax.f32 %v2231, 0.0
    %v2292 = vmax.f32 %v2236, 0.0
    %v2293 = vmax.f32 %v2239, 0.0
    %v2294 = vmax.f32 %v2244, 0.0
    %v2295 = vmax.f32 %v2247, 0.0
    %v2296 = vmax.f32 %v2252, 0.0
    %v2297 = vmax.f32 %v2255, 0.0
    %v2298 = vmax.f32 %v2260, 0.0
    %v2299 = vmax.f32 %v2263, 0.0
    %v2300 = vmax.f32 %v2268, 0.0
    %v2301 = vmax.f32 %v2271, 0.0
    %v2302 = vmax.f32 %v2276, 0.0
    %v2303 = vmax.f32 %v2279, 0.0
    %v2304 = vmax.f32 %v2284, 0.0
    %v2305 = vmax.f32 %v2287, 0.0
    %v2306 = vpack.c.bf16 %v2291, %v2290
    %v2307 = vpack.c.bf16 %v2293, %v2292
    %v2308 = vpack.c.bf16 %v2295, %v2294
    %v2309 = vpack.c.bf16 %v2297, %v2296
    %v2310 = vpack.c.bf16 %v2299, %v2298
    %v2311 = vpack.c.bf16 %v2301, %v2300
    %v2312 = vpack.c.bf16 %v2303, %v2302
    %v2313 = vpack.c.bf16 %v2305, %v2304
    %v2314 = vld [vmem:[%s5] sm:$0xf]
    %v2315 = vld [vmem:[%s5 + $0x4] sm:$0xf]
    %v2316 = vld [vmem:[%s5 + $0x8] sm:$0xf]
    %v2317 = vld [vmem:[%s5 + $0xc] sm:$0xf]
    %v2318 = vld [vmem:[%s5 + $0x10] sm:$0xf]
    %v2319 = vld [vmem:[%s5 + $0x14] sm:$0xf]
    %v2320 = vld [vmem:[%s5 + $0x18] sm:$0xf]
    %v2321 = vld [vmem:[%s5 + $0x1c] sm:$0xf]
    %v2322 = vld [vmem:[%s5 + $0x20] sm:$0xf]
    %v2323 = vld [vmem:[%s5 + $0x24] sm:$0xf]
    %v2324 = vld [vmem:[%s5 + $0x28] sm:$0xf]
    %v2325 = vld [vmem:[%s5 + $0x2c] sm:$0xf]
    %v2326 = vld [vmem:[%s5 + $0x30] sm:$0xf]
    %v2327 = vld [vmem:[%s5 + $0x34] sm:$0xf]
    %v2328 = vld [vmem:[%s5 + $0x38] sm:$0xf]
    %v2329 = vld [vmem:[%s5 + $0x3c] sm:$0xf]
    %s2330 = sld [smem:[#allocation2]]
    %v2331 = vstv %s2330
    %v2348 = vunpack.c.l.b16 %v2314
    %v2349 = vunpack.c.l.b16 %v2315
    %v2350 = vunpack.c.l.b16 %v2316
    %v2351 = vunpack.c.l.b16 %v2317
    %v2352 = vunpack.c.l.b16 %v2318
    %v2353 = vunpack.c.l.b16 %v2319
    %v2354 = vunpack.c.l.b16 %v2320
    %v2355 = vunpack.c.l.b16 %v2321
    %v2356 = vunpack.c.l.b16 %v2322
    %v2357 = vunpack.c.l.b16 %v2323
    %v2358 = vunpack.c.l.b16 %v2324
    %v2359 = vunpack.c.l.b16 %v2325
    %v2360 = vunpack.c.l.b16 %v2326
    %v2361 = vunpack.c.l.b16 %v2327
    %v2362 = vunpack.c.l.b16 %v2328
    %v2363 = vunpack.c.l.b16 %v2329
    %v2364 = vpack.c.b16 %v2349, %v2348
    %v2365 = vpack.c.b16 %v2351, %v2350
    %v2366 = vpack.c.b16 %v2353, %v2352
    %v2367 = vpack.c.b16 %v2355, %v2354
    %v2368 = vpack.c.b16 %v2357, %v2356
    %v2369 = vpack.c.b16 %v2359, %v2358
    %v2370 = vpack.c.b16 %v2361, %v2360
    %v2371 = vpack.c.b16 %v2363, %v2362
    %2380 = vmatprep.subr.bf16.mxu0 0
    %2381 = vmatpush1.bf16.msra.mxu0 %v2371
    %2382 = vmatprep.subr.bf16.mxu0 0
    %2383 = vmatpush1.bf16.msra.mxu0 %v2370
    %2384 = vmatprep.subr.bf16.mxu0 0
    %2385 = vmatpush1.bf16.msra.mxu0 %v2369
    %2386 = vmatprep.subr.bf16.mxu0 0
    %2387 = vmatpush1.bf16.msra.mxu0 %v2368
    %2388 = vmatprep.subr.bf16.mxu0 0
    %2389 = vmatpush1.bf16.msra.mxu0 %v2367
    %2390 = vmatprep.subr.bf16.mxu0 0
    %2391 = vmatpush1.bf16.msra.mxu0 %v2366
    %2392 = vmatprep.subr.bf16.mxu0 0
    %2393 = vmatpush1.bf16.msra.mxu0 %v2365
    %2394 = vmatprep.subr.bf16.mxu0 0
    %2395 = vmatpush1.bf16.msra.mxu0 %v2364
    %2396 = vmatprep.subr.bf16.mxu0 0
    %2397 = vmatpush2.bf16.msra.mxu0 0
    %2398 = vmatprep.subr.bf16.mxu0 0
    %2399 = vmatpush2.bf16.msra.mxu0 0
    %2400 = vmatprep.subr.bf16.mxu0 0
    %2401 = vmatpush2.bf16.msra.mxu0 0
    %2402 = vmatprep.subr.bf16.mxu0 0
    %2403 = vmatpush2.bf16.msra.mxu0 0
    %2404 = vmatprep.subr.bf16.mxu0 0
    %2405 = vmatpush2.bf16.msra.mxu0 0
    %2406 = vmatprep.subr.bf16.mxu0 0
    %2407 = vmatpush2.bf16.msra.mxu0 0
    %2408 = vmatprep.subr.bf16.mxu0 0
    %2409 = vmatpush2.bf16.msra.mxu0 0
    %2410 = vmatprep.subr.bf16.mxu0 0
    %2411 = vmatpush2.bf16.msra.mxu0 0
    %2412 = vmatprep.mubr.bf16.mxu0 0
    %2413 = vmatmul.mubr.bf16.gmra.mxu0 %v2306
    %v2414 = vpop.f32.mrf.mxu0
    %v2415 = vadd.f32 %v2331, %v2414
    %v2416 = vpop.f32.mrf.mxu0
    %v2417 = vpop.f32.mrf.mxu0
    %v2418 = vadd.f32 %v2331, %v2417
    %v2419 = vpop.f32.mrf.mxu0
    %2420 = vmatprep.mubr.bf16.mxu0 0
    %2421 = vmatmul.mubr.bf16.gmra.mxu0 %v2307
    %v2422 = vpop.f32.mrf.mxu0
    %v2423 = vadd.f32 %v2331, %v2422
    %v2424 = vpop.f32.mrf.mxu0
    %v2425 = vpop.f32.mrf.mxu0
    %v2426 = vadd.f32 %v2331, %v2425
    %v2427 = vpop.f32.mrf.mxu0
    %2428 = vmatprep.mubr.bf16.mxu0 0
    %2429 = vmatmul.mubr.bf16.gmra.mxu0 %v2308
    %v2430 = vpop.f32.mrf.mxu0
    %v2431 = vadd.f32 %v2331, %v2430
    %v2432 = vpop.f32.mrf.mxu0
    %v2433 = vpop.f32.mrf.mxu0
    %v2434 = vadd.f32 %v2331, %v2433
    %v2435 = vpop.f32.mrf.mxu0
    %2436 = vmatprep.mubr.bf16.mxu0 0
    %2437 = vmatmul.mubr.bf16.gmra.mxu0 %v2309
    %v2438 = vpop.f32.mrf.mxu0
    %v2439 = vadd.f32 %v2331, %v2438
    %v2440 = vpop.f32.mrf.mxu0
    %v2441 = vpop.f32.mrf.mxu0
    %v2442 = vadd.f32 %v2331, %v2441
    %v2443 = vpop.f32.mrf.mxu0
    %2444 = vmatprep.mubr.bf16.mxu0 0
    %2445 = vmatmul.mubr.bf16.gmra.mxu0 %v2310
    %v2446 = vpop.f32.mrf.mxu0
    %v2447 = vadd.f32 %v2331, %v2446
    %v2448 = vpop.f32.mrf.mxu0
    %v2449 = vpop.f32.mrf.mxu0
    %v2450 = vadd.f32 %v2331, %v2449
    %v2451 = vpop.f32.mrf.mxu0
    %2452 = vmatprep.mubr.bf16.mxu0 0
    %2453 = vmatmul.mubr.bf16.gmra.mxu0 %v2311
    %v2454 = vpop.f32.mrf.mxu0
    %v2455 = vadd.f32 %v2331, %v2454
    %v2456 = vpop.f32.mrf.mxu0
    %v2457 = vpop.f32.mrf.mxu0
    %v2458 = vadd.f32 %v2331, %v2457
    %v2459 = vpop.f32.mrf.mxu0
    %2460 = vmatprep.mubr.bf16.mxu0 0
    %2461 = vmatmul.mubr.bf16.gmra.mxu0 %v2312
    %v2462 = vpop.f32.mrf.mxu0
    %v2463 = vadd.f32 %v2331, %v2462
    %v2464 = vpop.f32.mrf.mxu0
    %v2465 = vpop.f32.mrf.mxu0
    %v2466 = vadd.f32 %v2331, %v2465
    %v2467 = vpop.f32.mrf.mxu0
    %2468 = vmatprep.mubr.bf16.mxu0 0
    %2469 = vmatmul.mubr.bf16.gmra.mxu0 %v2313
    %v2470 = vpop.f32.mrf.mxu0
    %v2471 = vadd.f32 %v2331, %v2470
    %v2472 = vpop.f32.mrf.mxu0
    %v2473 = vpop.f32.mrf.mxu0
    %v2474 = vadd.f32 %v2331, %v2473
    %v2475 = vpop.f32.mrf.mxu0
    %2476 = vdwg.mxu0
    %2477 = vst [vmem:[#allocation3] sm:$0xff] %v2415
    %2478 = vst [vmem:[#allocation3 + $0x8] sm:$0xff] %v2418
    %2479 = vst [vmem:[#allocation3 + $0x10] sm:$0xff] %v2423
    %2480 = vst [vmem:[#allocation3 + $0x18] sm:$0xff] %v2426
    %2481 = vst [vmem:[#allocation3 + $0x20] sm:$0xff] %v2431
    %2482 = vst [vmem:[#allocation3 + $0x28] sm:$0xff] %v2434
    %2483 = vst [vmem:[#allocation3 + $0x30] sm:$0xff] %v2439
    %2484 = vst [vmem:[#allocation3 + $0x38] sm:$0xff] %v2442
    %2485 = vst [vmem:[#allocation3 + $0x40] sm:$0xff] %v2447
    %2486 = vst [vmem:[#allocation3 + $0x48] sm:$0xff] %v2450
    %2487 = vst [vmem:[#allocation3 + $0x50] sm:$0xff] %v2455
    %2488 = vst [vmem:[#allocation3 + $0x58] sm:$0xff] %v2458
    %2489 = vst [vmem:[#allocation3 + $0x60] sm:$0xff] %v2463
    %2490 = vst [vmem:[#allocation3 + $0x68] sm:$0xff] %v2466
    %2491 = vst [vmem:[#allocation3 + $0x70] sm:$0xff] %v2471
    %2492 = vst [vmem:[#allocation3 + $0x78] sm:$0xff] %v2474
    // Predicated region
    $region30: #{tpu_custom_call.1} parent=1 // pred_check
      _
    $region31: #{tpu_custom_call.1} parent=1 // pred_check_branch
      %2494 = sbr.rel (0) target = $region33
    $region32: #{tpu_custom_call.1} parent=1 // pred_region
      %s2496 = ssub.s32 2048, 2048
      %2497 = vsyncadd [#allocation4], %s2496
      %s2498 = sshll.u32 [#allocation3], 4
      %s2499 = int_to_ptr.vmem [resolvable:$true] %s2498
      %2504 = dma.vmem_to_hbm [thread:$0]  %s2499, 2048, %s7, [#allocation4], 128, 128, 8
    $region33: #{tpu_custom_call.1} parent=1 // pred_fallthru
      _
    // Predicated region
    $region34: #{tpu_custom_call.1} parent=1 // pred_check
      _
    $region35: #{tpu_custom_call.1} parent=1 // pred_check_branch
      %2506 = sbr.rel (0) target = $region37
    $region36: #{tpu_custom_call.1} parent=1 // pred_region
      %2507 = dma.done [#allocation4], 2048
    $region37: #{tpu_custom_call.1} parent=1 // pred_fallthru
      _
    %2508 = vsyncpa [#allocation4], 1

</llo_original>
